<compile_context>
chip_gen: v5e
topology: v5e:2x2
jax: 0.10.0
libtpu: 0.0.40
codegen_flags: <defaults>
</compile_context>

<pallas_src>
import functools

import jax
import jax.numpy as jnp
from jax.experimental import pallas as pl
from jax.experimental.pallas import tpu as pltpu

TAU = 0.01  # gumbel-softmax temperature used in mask_gumbel_softmax
_HIGHEST = jax.lax.Precision.HIGHEST


def _pick_tile(n, target, align):
    """Largest divisor of n that is <= target and a multiple of `align`.
    Falls back to the full extent n if no such divisor exists."""
    if n <= target:
        return n
    for t in range(target, align - 1, -1):
        if t % align == 0 and n % t == 0:
            return t
    return n


def _mhha_kernel(q_ref, k_ref, gd_ref,
                 wq_ref, bq_ref, wk_ref, bk_ref, wd_ref,
                 out_ref, qa_scr, *, num_heads, embed_dim, tq_sub):
    """One grid step = one (batch, q-tile, k-tile), all heads.

    q_ref : (1, TQ, Dq)          k_ref : (1, TK, Dk)
    gd_ref: (1, H, TQ, TK)       pre-differenced gumbel noise (g0 - g1)
    wq_ref: (H, Dq, E)  bq_ref: (H, 1, E)   fused (outer . additive) query w/b
    wk_ref: (H, Dk, E)  bk_ref: (H, 1, E)   fused key w/b
    wd_ref: (1, E)               wv[0] - wv[1]
    out_ref: (1, H, TQ, TK)
    qa_scr : VMEM (TQ, E) f32 scratch (lets the q-sub loop slice a ref, not a value)
    """
    H, E = num_heads, embed_dim
    TQ = q_ref.shape[1]
    inv_tau = 1.0 / TAU
    n_sub = TQ // tq_sub

    q2d = q_ref[0]                         # (TQ, Dq)  loaded once per step
    k2d = k_ref[0]                         # (TK, Dk)
    wd_b = wd_ref[...].reshape(1, 1, E)    # hoisted out of all loops (no re-broadcast)

    # Static unroll over heads (small compile-time constant).
    # TODO(synk): switch to lax.fori_loop if num_heads ever grows large.
    for h in range(H):
        # Per-head fused projections: leading-dim indexing of the weight refs,
        # so each qa/ka tile is produced directly in its own (rows, E) layout
        # (no non-128-aligned lane slicing).  Keep f32 + HIGHEST precision:
        # tau=0.01 amplifies logit error 100x before the sigmoid.
        qa_scr[...] = (jnp.dot(q2d, wq_ref[h], precision=_HIGHEST,
                               preferred_element_type=jnp.float32) + bq_ref[h])   # (TQ, E)
        ka = (jnp.dot(k2d, wk_ref[h], precision=_HIGHEST,
                      preferred_element_type=jnp.float32) + bk_ref[h])            # (TK, E)

        def qsub_body(i, carry, h=h, ka=ka):
            r0 = pl.multiple_of(i * tq_sub, tq_sub)
            qa_s = qa_scr[pl.ds(r0, tq_sub), :]                        # (tq_sub, E)
            # Bounded intermediate: (tq_sub, TK, E) only.  EUP-bound tanh.
            feat = jnp.tanh(qa_s[:, None, :] + ka[None, :, :])
            s = jnp.sum(feat * wd_b, axis=-1)                          # (tq_sub, TK) = s0 - s1
            z = (s + gd_ref[0, h, pl.ds(r0, tq_sub), :]) * inv_tau
            # softmax over 2 logits == sigmoid of the difference (stable, one exp).
            ez = jnp.exp(-jnp.abs(z))
            r = 1.0 / (1.0 + ez)
            out_ref[0, h, pl.ds(r0, tq_sub), :] = jnp.where(z >= 0, r, ez * r)
            return carry

        jax.lax.fori_loop(0, n_sub, qsub_body, 0, unroll=True)


def multi_head_hard_attention(queries, keys, gumbel, params, num_heads, mask=None):
    """queries: (B, Q, Dq), keys: (B, K, Dk), gumbel: (B*num_heads, 2, Q, K).
    Returns hard attention weights of shape (B*num_heads, Q, K)."""
    if mask is not None:
        # TODO(synk): masked path needs the (undefined) `sequence_mask` helper.
        raise NotImplementedError("mask != None path is not implemented")

    B, Q, Dq = queries.shape
    _, K, Dk = keys.shape
    E = params["wq_a"].shape[-1]
    H = num_heads

    # ---- wrapper-side algebraic fusion (pure weight prep, f32-exact precision) ----
    # (x @ Wo + b) @ Wa  ==  x @ (Wo @ Wa) + (b @ Wa)
    wq_f = jnp.einsum("hde,ef->hdf", params["wq_o"], params["wq_a"], precision=_HIGHEST)  # (H, Dq, E)
    wk_f = jnp.einsum("hde,ef->hdf", params["wk_o"], params["wk_a"], precision=_HIGHEST)  # (H, Dk, E)
    bq_f = jnp.einsum("hoe,ef->hof", params["bq_o"], params["wq_a"], precision=_HIGHEST)  # (H, 1, E)
    bk_f = jnp.einsum("hoe,ef->hof", params["bk_o"], params["wk_a"], precision=_HIGHEST)  # (H, 1, E)

    # softmax over 2 logits == sigmoid of the difference: pre-difference the value
    # projection and the gumbel noise (halves reduction work + gumbel HBM bytes).
    w_diff = (params["wv_a"][0] - params["wv_a"][1]).reshape(1, E)     # (1, E)
    g_diff = (gumbel[:, 0] - gumbel[:, 1]).reshape(B, H, Q, K)         # (B, H, Q, K)

    # ---- tiling ----
    TQ = _pick_tile(Q, 64, 8)       # query rows per grid step
    TK = _pick_tile(K, 256, 128)    # keys per grid step; multiple of 128 when possible
    tq_sub = 8 if TQ % 8 == 0 else TQ
    grid = (B, Q // TQ, K // TK)

    kernel = functools.partial(_mhha_kernel, num_heads=H, embed_dim=E, tq_sub=tq_sub)

    out = pl.pallas_call(
        kernel,
        out_shape=jax.ShapeDtypeStruct((B, H, Q, K), jnp.float32),
        grid_spec=pltpu.PrefetchScalarGridSpec(
            num_scalar_prefetch=0,
            grid=grid,
            in_specs=[
                pl.BlockSpec((1, TQ, Dq), lambda b, qi, ki: (b, qi, 0)),     # queries tile
                pl.BlockSpec((1, TK, Dk), lambda b, qi, ki: (b, ki, 0)),     # keys tile
                pl.BlockSpec((1, H, TQ, TK), lambda b, qi, ki: (b, 0, qi, ki)),  # gumbel diff
                pl.BlockSpec((H, Dq, E), lambda b, qi, ki: (0, 0, 0)),       # fused Wq (resident)
                pl.BlockSpec((H, 1, E), lambda b, qi, ki: (0, 0, 0)),        # fused bq (resident)
                pl.BlockSpec((H, Dk, E), lambda b, qi, ki: (0, 0, 0)),       # fused Wk (resident)
                pl.BlockSpec((H, 1, E), lambda b, qi, ki: (0, 0, 0)),        # fused bk (resident)
                pl.BlockSpec((1, E), lambda b, qi, ki: (0, 0)),              # wv diff  (resident)
            ],
            out_specs=pl.BlockSpec((1, H, TQ, TK), lambda b, qi, ki: (b, 0, qi, ki)),
            scratch_shapes=[pltpu.VMEM((TQ, E), jnp.float32)],               # per-head qa tile
        ),
        compiler_params=pltpu.CompilerParams(
            dimension_semantics=("parallel", "parallel", "parallel"),
            vmem_limit_bytes=48 * 1024 * 1024,   # explicit; well under v7x's 64 MiB physical
        ),
    )(queries, keys, g_diff, wq_f, bq_f, wk_f, bk_f, w_diff)

    return out.reshape(B * H, Q, K)


def ref_forward(queries, keys, gumbel, params, num_heads, tau=TAU):
    """Pure-JAX reference reproducing the PyTorch forward (mask=None), in the
    original (un-fused) operation order, at f32-exact matmul precision."""
    B, Q, _ = queries.shape
    _, K, _ = keys.shape
    E = params["wq_o"].shape[-1]
    qp = jnp.einsum("bqd,hde->bhqe", queries, params["wq_o"], precision=_HIGHEST) + params["bq_o"][None]
    kp = jnp.einsum("bkd,hde->bhke", keys, params["wk_o"], precision=_HIGHEST) + params["bk_o"][None]
    qp = qp.reshape(B * num_heads, Q, E)     # == transpose_input(w_q(queries), num_heads)
    kp = kp.reshape(B * num_heads, K, E)
    qa = jnp.einsum("bqe,ef->bqf", qp, params["wq_a"], precision=_HIGHEST)
    ka = jnp.einsum("bke,ef->bkf", kp, params["wk_a"], precision=_HIGHEST)
    feat = jnp.tanh(qa[:, :, None, :] + ka[:, None, :, :])              # (BH, Q, K, E)
    scores = jnp.einsum("bqke,ce->bqkc", feat, params["wv_a"], precision=_HIGHEST)  # (BH, Q, K, 2)
    g = jnp.transpose(gumbel, (0, 2, 3, 1))                              # (BH, Q, K, 2)
    return jax.nn.softmax((scores + g) / tau, axis=-1)[..., 0]


if __name__ == "__main__":
    batch, num_heads, embed_dim = 2, 2, 32
    query_size, key_size = 16, 16
    Q, K = 8, 8

    key = jax.random.PRNGKey(0)
    ks = jax.random.split(key, 10)

    queries = jax.random.normal(ks[0], (batch, Q, query_size), jnp.float32)
    keys = jax.random.normal(ks[1], (batch, K, key_size), jnp.float32)

    # Deterministic synthetic parameters (shapes implied by nn.Module __init__):
    #   w_q: Linear(query_size, embed_dim*num_heads) -> per-head (H, Dq, E) + bias (H, 1, E)
    #   w_k: Linear(key_size,   embed_dim*num_heads) -> (H, Dk, E) + (H, 1, E)
    #   AdditiveAttention: w_q/w_k Linear(E, E, bias=False) stored transposed (E, E),
    #                      w_v Linear(E, 2, bias=False) stored as (2, E)
    params = {
        "wq_o": 0.1 * jax.random.normal(ks[2], (num_heads, query_size, embed_dim), jnp.float32),
        "bq_o": 0.1 * jax.random.normal(ks[3], (num_heads, 1, embed_dim), jnp.float32),
        "wk_o": 0.1 * jax.random.normal(ks[4], (num_heads, key_size, embed_dim), jnp.float32),
        "bk_o": 0.1 * jax.random.normal(ks[5], (num_heads, 1, embed_dim), jnp.float32),
        "wq_a": 0.1 * jax.random.normal(ks[6], (embed_dim, embed_dim), jnp.float32),
        "wk_a": 0.1 * jax.random.normal(ks[7], (embed_dim, embed_dim), jnp.float32),
        "wv_a": 0.1 * jax.random.normal(ks[8], (2, embed_dim), jnp.float32),
    }

    # Standard-Gumbel noise for F.gumbel_softmax, sampled once, shape (BH, 2, Q, K).
    gumbel = jax.random.gumbel(ks[9], (batch * num_heads, 2, Q, K), jnp.float32)

    out = multi_head_hard_attention(queries, keys, gumbel, params, num_heads, mask=None)
    out = jax.block_until_ready(out)

    ref = ref_forward(queries, keys, gumbel, params, num_heads)
    assert out.shape == (batch * num_heads, Q, K), out.shape
    # Mathematically identical modulo the fused-projection reassociation; tau=0.01
    # amplifies f32 rounding 100x before the sigmoid, hence the small abs tolerance
    # (real bugs produce O(0.5) errors because the gate saturates near 0/1).
    assert jnp.allclose(out, ref, atol=5e-3, rtol=0.0), float(jnp.max(jnp.abs(out - ref)))

    print("KERNEL_OK")
</pallas_src>

<mosaic_0001>
module attributes {stable_mosaic.version = 11 : i64} {
  func.func @_mhha_kernel(%arg0: i32, %arg1: i32, %arg2: i32, %arg3: memref<1x8x16xf32, #tpu.memory_space<vmem>>, %arg4: memref<1x8x16xf32, #tpu.memory_space<vmem>>, %arg5: memref<1x2x8x8xf32, #tpu.memory_space<vmem>>, %arg6: memref<2x16x32xf32, #tpu.memory_space<vmem>>, %arg7: memref<2x1x32xf32, #tpu.memory_space<vmem>>, %arg8: memref<2x16x32xf32, #tpu.memory_space<vmem>>, %arg9: memref<2x1x32xf32, #tpu.memory_space<vmem>>, %arg10: memref<1x32xf32, #tpu.memory_space<vmem>>, %arg11: memref<1x2x8x8xf32, #tpu.memory_space<vmem>>, %arg12: memref<8x32xf32, #tpu.memory_space<vmem>>) attributes {dimension_semantics = [#tpu.dimension_semantics<parallel>, #tpu.dimension_semantics<parallel>, #tpu.dimension_semantics<parallel>], iteration_bounds = array<i64: 2, 1, 1>, scalar_prefetch = 0 : i64, scratch_operands = 1 : i64, tpu.core_type = #tpu.core_type<tc>, window_params = [{transform_indices = @transform_0, window_bounds = array<i64: 1, 8, 16>}, {transform_indices = @transform_1, window_bounds = array<i64: 1, 8, 16>}, {transform_indices = @transform_2, window_bounds = array<i64: 1, 2, 8, 8>}, {pipeline_mode = #tpu.pipeline_mode<synchronous>, transform_indices = @transform_3, window_bounds = array<i64: 2, 16, 32>}, {pipeline_mode = #tpu.pipeline_mode<synchronous>, transform_indices = @transform_4, window_bounds = array<i64: 2, 1, 32>}, {pipeline_mode = #tpu.pipeline_mode<synchronous>, transform_indices = @transform_5, window_bounds = array<i64: 2, 16, 32>}, {pipeline_mode = #tpu.pipeline_mode<synchronous>, transform_indices = @transform_6, window_bounds = array<i64: 2, 1, 32>}, {pipeline_mode = #tpu.pipeline_mode<synchronous>, transform_indices = @transform_7, window_bounds = array<i64: 1, 32>}, {transform_indices = @transform_8, window_bounds = array<i64: 1, 2, 8, 8>}]} {
    %c0 = arith.constant 0 : index
    %c0_0 = arith.constant 0 : index
    %c0_1 = arith.constant 0 : index
    %0 = vector.load %arg3[%c0, %c0_0, %c0_1] : memref<1x8x16xf32, #tpu.memory_space<vmem>>, vector<1x8x16xf32>
    %1 = vector.shape_cast %0 : vector<1x8x16xf32> to vector<8x16xf32>
    %c0_2 = arith.constant 0 : index
    %c0_3 = arith.constant 0 : index
    %c0_4 = arith.constant 0 : index
    %2 = vector.load %arg4[%c0_2, %c0_3, %c0_4] : memref<1x8x16xf32, #tpu.memory_space<vmem>>, vector<1x8x16xf32>
    %3 = vector.shape_cast %2 : vector<1x8x16xf32> to vector<8x16xf32>
    %c0_5 = arith.constant 0 : index
    %c0_6 = arith.constant 0 : index
    %4 = vector.load %arg10[%c0_5, %c0_6] : memref<1x32xf32, #tpu.memory_space<vmem>>, vector<1x32xf32>
    %5 = vector.shape_cast %4 : vector<1x32xf32> to vector<1x1x32xf32>
    %c0_7 = arith.constant 0 : index
    %c0_8 = arith.constant 0 : index
    %c0_9 = arith.constant 0 : index
    %6 = vector.load %arg6[%c0_7, %c0_8, %c0_9] : memref<2x16x32xf32, #tpu.memory_space<vmem>>, vector<1x16x32xf32>
    %7 = vector.shape_cast %6 : vector<1x16x32xf32> to vector<16x32xf32>
    %cst = arith.constant dense<0.000000e+00> : vector<8x32xf32>
    %8 = tpu.matmul %1, %7, %cst {dimension_numbers = #tpu.dot_dimension_numbers<[1], [0], [0], [1], [0, 0, 1, 1], [], []>, precision = #tpu.contract_precision<fp32>} : vector<8x16xf32>, vector<16x32xf32>, vector<8x32xf32> -> vector<8x32xf32>
    %c0_10 = arith.constant 0 : index
    %c0_11 = arith.constant 0 : index
    %c0_12 = arith.constant 0 : index
    %9 = vector.load %arg7[%c0_10, %c0_11, %c0_12] : memref<2x1x32xf32, #tpu.memory_space<vmem>>, vector<1x1x32xf32>
    %10 = vector.shape_cast %9 : vector<1x1x32xf32> to vector<1x32xf32>
    %11 = vector.broadcast %10 : vector<1x32xf32> to vector<8x32xf32>
    %12 = arith.addf %8, %11 : vector<8x32xf32>
    %c0_13 = arith.constant 0 : index
    %c0_14 = arith.constant 0 : index
    %13 = vector.load %arg12[%c0_13, %c0_14] : memref<8x32xf32, #tpu.memory_space<vmem>>, vector<8x32xf32>
    tpu.vector_store %arg12[%c0_13, %c0_14], %12 {strides = array<i32>} : memref<8x32xf32, #tpu.memory_space<vmem>>, vector<8x32xf32>,
    %c0_15 = arith.constant 0 : index
    %c0_16 = arith.constant 0 : index
    %c0_17 = arith.constant 0 : index
    %14 = vector.load %arg8[%c0_15, %c0_16, %c0_17] : memref<2x16x32xf32, #tpu.memory_space<vmem>>, vector<1x16x32xf32>
    %15 = vector.shape_cast %14 : vector<1x16x32xf32> to vector<16x32xf32>
    %cst_18 = arith.constant dense<0.000000e+00> : vector<8x32xf32>
    %16 = tpu.matmul %3, %15, %cst_18 {dimension_numbers = #tpu.dot_dimension_numbers<[1], [0], [0], [1], [0, 0, 1, 1], [], []>, precision = #tpu.contract_precision<fp32>} : vector<8x16xf32>, vector<16x32xf32>, vector<8x32xf32> -> vector<8x32xf32>
    %c0_19 = arith.constant 0 : index
    %c0_20 = arith.constant 0 : index
    %c0_21 = arith.constant 0 : index
    %17 = vector.load %arg9[%c0_19, %c0_20, %c0_21] : memref<2x1x32xf32, #tpu.memory_space<vmem>>, vector<1x1x32xf32>
    %18 = vector.shape_cast %17 : vector<1x1x32xf32> to vector<1x32xf32>
    %19 = vector.broadcast %18 : vector<1x32xf32> to vector<8x32xf32>
    %20 = arith.addf %16, %19 : vector<8x32xf32>
    %c0_i32 = arith.constant 0 : i32
    %c8_i32 = arith.constant 8 : i32
    %21 = arith.muli %c0_i32, %c8_i32 : i32
    %22 = tpu.assume_multiple %21, 8 : i32
    %23 = arith.index_cast %22 : i32 to index
    %c0_22 = arith.constant 0 : index
    %24 = vector.load %arg12[%23, %c0_22] : memref<8x32xf32, #tpu.memory_space<vmem>>, vector<8x32xf32>
    %25 = vector.shape_cast %24 : vector<8x32xf32> to vector<8x1x32xf32>
    %26 = vector.shape_cast %20 : vector<8x32xf32> to vector<1x8x32xf32>
    %27 = vector.broadcast %25 : vector<8x1x32xf32> to vector<8x8x32xf32>
    %28 = vector.broadcast %26 : vector<1x8x32xf32> to vector<8x8x32xf32>
    %29 = arith.addf %27, %28 : vector<8x8x32xf32>
    %30 = math.tanh %29 : vector<8x8x32xf32>
    %31 = vector.broadcast %5 : vector<1x1x32xf32> to vector<8x8x32xf32>
    %32 = arith.mulf %30, %31 : vector<8x8x32xf32>
    %cst_23 = arith.constant dense<0.000000e+00> : vector<8x8xf32>
    %33 = vector.multi_reduction <add>, %32, %cst_23 [2] : vector<8x8x32xf32> to vector<8x8xf32>
    %c0_24 = arith.constant 0 : index
    %c0_25 = arith.constant 0 : index
    %34 = arith.index_cast %22 : i32 to index
    %c0_26 = arith.constant 0 : index
    %35 = vector.load %arg5[%c0_24, %c0_25, %34, %c0_26] : memref<1x2x8x8xf32, #tpu.memory_space<vmem>>, vector<1x1x8x8xf32>
    %36 = vector.shape_cast %35 : vector<1x1x8x8xf32> to vector<8x8xf32>
    %37 = arith.addf %33, %36 : vector<8x8xf32>
    %cst_27 = arith.constant 1.000000e+02 : f32
    %38 = vector.broadcast %cst_27 : f32 to vector<8x8xf32>
    %39 = arith.mulf %37, %38 : vector<8x8xf32>
    %40 = math.absf %39 : vector<8x8xf32>
    %cst_28 = arith.constant 0.000000e+00 : f32
    %41 = vector.broadcast %cst_28 : f32 to vector<8x8xf32>
    %42 = arith.subf %41, %40 : vector<8x8xf32>
    %43 = math.exp %42 : vector<8x8xf32>
    %cst_29 = arith.constant 1.000000e+00 : f32
    %44 = vector.broadcast %cst_29 : f32 to vector<8x8xf32>
    %45 = arith.addf %44, %43 : vector<8x8xf32>
    %cst_30 = arith.constant 1.000000e+00 : f32
    %46 = vector.broadcast %cst_30 : f32 to vector<8x8xf32>
    %47 = arith.divf %46, %45 : vector<8x8xf32>
    %cst_31 = arith.constant 0.000000e+00 : f32
    %48 = vector.broadcast %cst_31 : f32 to vector<8x8xf32>
    %49 = arith.cmpf oge, %39, %48 : vector<8x8xf32>
    %50 = arith.mulf %43, %47 : vector<8x8xf32>
    %51 = arith.select %49, %47, %50 : vector<8x8xi1>, vector<8x8xf32>
    %c0_32 = arith.constant 0 : index
    %c0_33 = arith.constant 0 : index
    %52 = arith.index_cast %22 : i32 to index
    %c0_34 = arith.constant 0 : index
    %53 = vector.load %arg11[%c0_32, %c0_33, %52, %c0_34] : memref<1x2x8x8xf32, #tpu.memory_space<vmem>>, vector<1x1x8x8xf32>
    %54 = vector.shape_cast %53 : vector<1x1x8x8xf32> to vector<8x8xf32>
    %55 = vector.shape_cast %51 : vector<8x8xf32> to vector<1x1x8x8xf32>
    tpu.vector_store %arg11[%c0_32, %c0_33, %52, %c0_34], %55 {strides = array<i32>} : memref<1x2x8x8xf32, #tpu.memory_space<vmem>>, vector<1x1x8x8xf32>,
    %c1_i32 = arith.constant 1 : i32
    %c1 = arith.constant 1 : index
    %c0_35 = arith.constant 0 : index
    %c0_36 = arith.constant 0 : index
    %56 = vector.load %arg6[%c1, %c0_35, %c0_36] : memref<2x16x32xf32, #tpu.memory_space<vmem>>, vector<1x16x32xf32>
    %57 = vector.shape_cast %56 : vector<1x16x32xf32> to vector<16x32xf32>
    %cst_37 = arith.constant dense<0.000000e+00> : vector<8x32xf32>
    %58 = tpu.matmul %1, %57, %cst_37 {dimension_numbers = #tpu.dot_dimension_numbers<[1], [0], [0], [1], [0, 0, 1, 1], [], []>, precision = #tpu.contract_precision<fp32>} : vector<8x16xf32>, vector<16x32xf32>, vector<8x32xf32> -> vector<8x32xf32>
    %c1_38 = arith.constant 1 : index
    %c0_39 = arith.constant 0 : index
    %c0_40 = arith.constant 0 : index
    %59 = vector.load %arg7[%c1_38, %c0_39, %c0_40] : memref<2x1x32xf32, #tpu.memory_space<vmem>>, vector<1x1x32xf32>
    %60 = vector.shape_cast %59 : vector<1x1x32xf32> to vector<1x32xf32>
    %61 = vector.broadcast %60 : vector<1x32xf32> to vector<8x32xf32>
    %62 = arith.addf %58, %61 : vector<8x32xf32>
    %c0_41 = arith.constant 0 : index
    %c0_42 = arith.constant 0 : index
    %63 = vector.load %arg12[%c0_41, %c0_42] : memref<8x32xf32, #tpu.memory_space<vmem>>, vector<8x32xf32>
    tpu.vector_store %arg12[%c0_41, %c0_42], %62 {strides = array<i32>} : memref<8x32xf32, #tpu.memory_space<vmem>>, vector<8x32xf32>,
    %c1_43 = arith.constant 1 : index
    %c0_44 = arith.constant 0 : index
    %c0_45 = arith.constant 0 : index
    %64 = vector.load %arg8[%c1_43, %c0_44, %c0_45] : memref<2x16x32xf32, #tpu.memory_space<vmem>>, vector<1x16x32xf32>
    %65 = vector.shape_cast %64 : vector<1x16x32xf32> to vector<16x32xf32>
    %cst_46 = arith.constant dense<0.000000e+00> : vector<8x32xf32>
    %66 = tpu.matmul %3, %65, %cst_46 {dimension_numbers = #tpu.dot_dimension_numbers<[1], [0], [0], [1], [0, 0, 1, 1], [], []>, precision = #tpu.contract_precision<fp32>} : vector<8x16xf32>, vector<16x32xf32>, vector<8x32xf32> -> vector<8x32xf32>
    %c1_47 = arith.constant 1 : index
    %c0_48 = arith.constant 0 : index
    %c0_49 = arith.constant 0 : index
    %67 = vector.load %arg9[%c1_47, %c0_48, %c0_49] : memref<2x1x32xf32, #tpu.memory_space<vmem>>, vector<1x1x32xf32>
    %68 = vector.shape_cast %67 : vector<1x1x32xf32> to vector<1x32xf32>
    %69 = vector.broadcast %68 : vector<1x32xf32> to vector<8x32xf32>
    %70 = arith.addf %66, %69 : vector<8x32xf32>
    %c0_i32_50 = arith.constant 0 : i32
    %c8_i32_51 = arith.constant 8 : i32
    %71 = arith.muli %c0_i32_50, %c8_i32_51 : i32
    %72 = tpu.assume_multiple %71, 8 : i32
    %73 = arith.index_cast %72 : i32 to index
    %c0_52 = arith.constant 0 : index
    %74 = vector.load %arg12[%73, %c0_52] : memref<8x32xf32, #tpu.memory_space<vmem>>, vector<8x32xf32>
    %75 = vector.shape_cast %74 : vector<8x32xf32> to vector<8x1x32xf32>
    %76 = vector.shape_cast %70 : vector<8x32xf32> to vector<1x8x32xf32>
    %77 = vector.broadcast %75 : vector<8x1x32xf32> to vector<8x8x32xf32>
    %78 = vector.broadcast %76 : vector<1x8x32xf32> to vector<8x8x32xf32>
    %79 = arith.addf %77, %78 : vector<8x8x32xf32>
    %80 = math.tanh %79 : vector<8x8x32xf32>
    %81 = vector.broadcast %5 : vector<1x1x32xf32> to vector<8x8x32xf32>
    %82 = arith.mulf %80, %81 : vector<8x8x32xf32>
    %cst_53 = arith.constant dense<0.000000e+00> : vector<8x8xf32>
    %83 = vector.multi_reduction <add>, %82, %cst_53 [2] : vector<8x8x32xf32> to vector<8x8xf32>
    %c0_54 = arith.constant 0 : index
    %c1_55 = arith.constant 1 : index
    %84 = arith.index_cast %72 : i32 to index
    %c0_56 = arith.constant 0 : index
    %85 = vector.load %arg5[%c0_54, %c1_55, %84, %c0_56] : memref<1x2x8x8xf32, #tpu.memory_space<vmem>>, vector<1x1x8x8xf32>
    %86 = vector.shape_cast %85 : vector<1x1x8x8xf32> to vector<8x8xf32>
    %87 = arith.addf %83, %86 : vector<8x8xf32>
    %cst_57 = arith.constant 1.000000e+02 : f32
    %88 = vector.broadcast %cst_57 : f32 to vector<8x8xf32>
    %89 = arith.mulf %87, %88 : vector<8x8xf32>
    %90 = math.absf %89 : vector<8x8xf32>
    %cst_58 = arith.constant 0.000000e+00 : f32
    %91 = vector.broadcast %cst_58 : f32 to vector<8x8xf32>
    %92 = arith.subf %91, %90 : vector<8x8xf32>
    %93 = math.exp %92 : vector<8x8xf32>
    %cst_59 = arith.constant 1.000000e+00 : f32
    %94 = vector.broadcast %cst_59 : f32 to vector<8x8xf32>
    %95 = arith.addf %94, %93 : vector<8x8xf32>
    %cst_60 = arith.constant 1.000000e+00 : f32
    %96 = vector.broadcast %cst_60 : f32 to vector<8x8xf32>
    %97 = arith.divf %96, %95 : vector<8x8xf32>
    %cst_61 = arith.constant 0.000000e+00 : f32
    %98 = vector.broadcast %cst_61 : f32 to vector<8x8xf32>
    %99 = arith.cmpf oge, %89, %98 : vector<8x8xf32>
    %100 = arith.mulf %93, %97 : vector<8x8xf32>
    %101 = arith.select %99, %97, %100 : vector<8x8xi1>, vector<8x8xf32>
    %c0_62 = arith.constant 0 : index
    %c1_63 = arith.constant 1 : index
    %102 = arith.index_cast %72 : i32 to index
    %c0_64 = arith.constant 0 : index
    %103 = vector.load %arg11[%c0_62, %c1_63, %102, %c0_64] : memref<1x2x8x8xf32, #tpu.memory_space<vmem>>, vector<1x1x8x8xf32>
    %104 = vector.shape_cast %103 : vector<1x1x8x8xf32> to vector<8x8xf32>
    %105 = vector.shape_cast %101 : vector<8x8xf32> to vector<1x1x8x8xf32>
    tpu.vector_store %arg11[%c0_62, %c1_63, %102, %c0_64], %105 {strides = array<i32>} : memref<1x2x8x8xf32, #tpu.memory_space<vmem>>, vector<1x1x8x8xf32>,
    %c1_i32_65 = arith.constant 1 : i32
    return
  }
  func.func @transform_0(%arg0: i32, %arg1: i32, %arg2: i32) -> (i32, i32, i32) {
    %c0_i32 = arith.constant 0 : i32
    %c0_i32_0 = arith.constant 0 : i32
    return %arg0, %arg1, %c0_i32 : i32, i32, i32
  }
  func.func @transform_1(%arg0: i32, %arg1: i32, %arg2: i32) -> (i32, i32, i32) {
    %c0_i32 = arith.constant 0 : i32
    %c0_i32_0 = arith.constant 0 : i32
    return %arg0, %arg2, %c0_i32 : i32, i32, i32
  }
  func.func @transform_2(%arg0: i32, %arg1: i32, %arg2: i32) -> (i32, i32, i32, i32) {
    %c0_i32 = arith.constant 0 : i32
    %c0_i32_0 = arith.constant 0 : i32
    return %arg0, %c0_i32, %arg1, %arg2 : i32, i32, i32, i32
  }
  func.func @transform_3(%arg0: i32, %arg1: i32, %arg2: i32) -> (i32, i32, i32) {
    %c0_i32 = arith.constant 0 : i32
    %c0_i32_0 = arith.constant 0 : i32
    %c0_i32_1 = arith.constant 0 : i32
    %c0_i32_2 = arith.constant 0 : i32
    return %c0_i32, %c0_i32_0, %c0_i32_1 : i32, i32, i32
  }
  func.func @transform_4(%arg0: i32, %arg1: i32, %arg2: i32) -> (i32, i32, i32) {
    %c0_i32 = arith.constant 0 : i32
    %c0_i32_0 = arith.constant 0 : i32
    %c0_i32_1 = arith.constant 0 : i32
    %c0_i32_2 = arith.constant 0 : i32
    return %c0_i32, %c0_i32_0, %c0_i32_1 : i32, i32, i32
  }
  func.func @transform_5(%arg0: i32, %arg1: i32, %arg2: i32) -> (i32, i32, i32) {
    %c0_i32 = arith.constant 0 : i32
    %c0_i32_0 = arith.constant 0 : i32
    %c0_i32_1 = arith.constant 0 : i32
    %c0_i32_2 = arith.constant 0 : i32
    return %c0_i32, %c0_i32_0, %c0_i32_1 : i32, i32, i32
  }
  func.func @transform_6(%arg0: i32, %arg1: i32, %arg2: i32) -> (i32, i32, i32) {
    %c0_i32 = arith.constant 0 : i32
    %c0_i32_0 = arith.constant 0 : i32
    %c0_i32_1 = arith.constant 0 : i32
    %c0_i32_2 = arith.constant 0 : i32
    return %c0_i32, %c0_i32_0, %c0_i32_1 : i32, i32, i32
  }
  func.func @transform_7(%arg0: i32, %arg1: i32, %arg2: i32) -> (i32, i32) {
    %c0_i32 = arith.constant 0 : i32
    %c0_i32_0 = arith.constant 0 : i32
    %c0_i32_1 = arith.constant 0 : i32
    return %c0_i32, %c0_i32_0 : i32, i32
  }
  func.func @transform_8(%arg0: i32, %arg1: i32, %arg2: i32) -> (i32, i32, i32, i32) {
    %c0_i32 = arith.constant 0 : i32
    %c0_i32_0 = arith.constant 0 : i32
    return %arg0, %c0_i32, %arg1, %arg2 : i32, i32, i32, i32
  }
}

</mosaic_0001>

<llo_original>
// kernel: tpu_custom_call.1
$region0: #{tpu_custom_call.1}
  #allocation0 [shape = 'u32[]', space=smem, size = 0x4, offset = 0x4, fixed_abs, tag = 'smem constant byte address 0x4 - core index']
  #allocation1 [shape = 'u32[72,128]{1,0:T(1,128)}', space=vmem, size = 0x9000, scoped, tag = 'internal scratch']
  #allocation2 [shape = 'f32[8,32]{1,0:T(8,128)}', space=vmem, size = 0x1000, scoped, tag = 'scratch operand']
  %s0 = inlined_call_operand.hbm [shape: f32[2,8,16], index: 0, kind: input, shape index: {}]
  %s1 = inlined_call_operand.hbm [shape: f32[2,8,16], index: 1, kind: input, shape index: {}]
  %s2 = inlined_call_operand.hbm [shape: f32[2,2,8,8], index: 2, kind: input, shape index: {}]
  %s3 = inlined_call_operand.hbm [shape: f32[2,16,32], index: 3, kind: input, shape index: {}]
  %s4 = inlined_call_operand.vmem [shape: f32[2,1,32], index: 4, kind: input, shape index: {}]
  %s5 = inlined_call_operand.hbm [shape: f32[2,16,32], index: 5, kind: input, shape index: {}]
  %s6 = inlined_call_operand.vmem [shape: f32[2,1,32], index: 6, kind: input, shape index: {}]
  %s7 = inlined_call_operand.vmem [shape: f32[1,32], index: 7, kind: input, shape index: {}]
  %s8 = inlined_call_operand.hbm [shape: f32[2,2,8,8], index: 8, kind: output, shape index: {}]
  %s9 = sld [smem:[#allocation0]]
  $region85: #{tpu_custom_call.1} parent=0
    _
  %s11 = ssub.s32 1, %s9
  %s12 = scalar_select 0, %s11, %s9
  $region1: #{tpu_custom_call.1} parent=0
    #allocation3 [shape = 'u8[8192]{0}', space=vmem, size = 0x2000, scoped, tag = 'input window, operand 0']
    #allocation4 [shape = 's32[2]{0}', space=sflag, size = 0x8, scoped, tag = 'scoped memory for tpu_custom_call.1']
    #allocation5 [shape = 's32[2]{0}', space=sflag, size = 0x8, scoped, tag = 'scoped memory for tpu_custom_call.1']
    #allocation6 [shape = 'u8[8192]{0}', space=vmem, size = 0x2000, scoped, tag = 'input window, operand 1']
    #allocation7 [shape = 's32[2]{0}', space=sflag, size = 0x8, scoped, tag = 'scoped memory for tpu_custom_call.1']
    #allocation8 [shape = 'u8[16384]{0}', space=vmem, size = 0x4000, scoped, tag = 'input window, operand 2']
    #allocation9 [shape = 'u8[16384]{0}', space=vmem, size = 0x4000, scoped, tag = 'input window, operand 3, single buffered']
    #allocation10 [shape = 's32[1]{0}', space=sflag, size = 0x4, scoped, tag = 'scoped memory for tpu_custom_call.1']
    #allocation11 [shape = 'u8[16384]{0}', space=vmem, size = 0x4000, scoped, tag = 'input window, operand 5, single buffered']
    #allocation12 [shape = 'u8[16384]{0}', space=vmem, size = 0x4000, scoped, tag = 'output window, operand 0']
    %13 = vsyncpa [#allocation4], 0
    %s14 = scalar_lea.sflag [#allocation4], 1
    %15 = vsyncpa %s14, 0
    %16 = vsyncpa [#allocation7], 0
    %s17 = scalar_lea.sflag [#allocation7], 1
    %18 = vsyncpa %s17, 0
    %19 = vsyncpa [#allocation10], 0
    %20 = vsyncpa [#allocation5], 0
    %s21 = scalar_lea.sflag [#allocation5], 1
    %22 = vsyncpa %s21, 0
    loop: start=0, step=1, limit=4
    $region2: #{tpu_custom_call.1} parent=1 // loop_pre_header
      _
    $region3: #{tpu_custom_call.1} parent=1 // loop_header
      %s24 = sphi 0, %s28
      %p25 = scmp.ge.s32.totalorder %s24, 4
      %s31 = sphi 0, %s50
      %s32 = sphi 0, %s46
      %s33 = sphi 0, %s42
      %s34 = sphi 0, %s31
      %s35 = sphi 0, %s32
      %s36 = sphi 0, %s33
      %s37 = sphi 0, %s34
      %s38 = sphi 0, %s35
      %s39 = sphi 0, %s36
      %s55 = sphi 0, %s57
      %s58 = sphi 0, %s55
      %s59 = sphi 0, %s58
      %s75 = sphi 0, %s59
      %s83 = sphi 0, %s85
      %s86 = sphi 0, %s83
      %s87 = sphi 0, %s86
      %s103 = sphi 0, %s87
      %s113 = sphi 0, %s115
      %s116 = sphi 0, %s113
      %s117 = sphi 0, %s116
      %s133 = sphi 0, %s117
      %s137 = sphi 0, %s137
      %s139 = sphi 0, %s137
      %s140 = sphi 0, %s139
      %s154 = sphi 0, %s140
      %s158 = sphi 0, %s158
      %s160 = sphi 0, %s158
      %s161 = sphi 0, %s160
      %s175 = sphi 0, %s161
      %s179 = sphi 0, %s179
      %s181 = sphi 0, %s179
      %s182 = sphi 0, %s181
      %s196 = sphi 0, %s182
      %s200 = sphi 0, %s200
      %s202 = sphi 0, %s200
      %s203 = sphi 0, %s202
      %s217 = sphi 0, %s203
      %s221 = sphi 0, %s221
      %s223 = sphi 0, %s221
      %s224 = sphi 0, %s223
      %s238 = sphi 0, %s224
      %s248 = sphi 0, %s250
      %s251 = sphi 0, %s248
      %s252 = sphi 0, %s251
      %s268 = sphi 0, %s252
    $region4: #{tpu_custom_call.1} parent=1 // loop_header_branch
      %27 = sbr.rel (%p25) target = $region8
    $region5: #{tpu_custom_call.1} parent=1 // loop_body
      %s29 = ssub.s32 %s24, 1
      %s30 = ssub.s32 %s24, 2
      %s40 = sadd.s32 1, %s33
      %p41 = scmp.ge.s32.totalorder %s40, 1
      %s42 = scalar_select %p41, 0, %s40
      %s43 = sadd.s32 1, %s32
      %s44 = scalar_select %p41, %s43, %s32
      %p45 = scmp.ge.s32.totalorder %s44, 1
      %s46 = scalar_select %p45, 0, %s44
      %s47 = sadd.s32 1, %s31
      %s48 = scalar_select %p45, %s47, %s31
      %p49 = scmp.ge.s32.totalorder %s48, 2
      %s50 = scalar_select %p49, 0, %s48
      %s51 = ssub.s32 %s31, %s50
      %s52 = ssub.s32 %s32, %s46
      %s53 = sor.u32 %s51, %s52
      %p54 = scmp.eq.s32.totalorder %s53, 0
      %s56 = sadd.s32 %s55, 1
      %s57 = scalar_select %p54, %s55, %s56
      %p60 = pneg %p54
      %p61 = scmp.eq.s32.totalorder %s24, 1
      %p62 = por %p60, %p61
      %p63 = scmp.ne.s32.totalorder %s55, %s58
      %p64 = scmp.eq.s32.totalorder %s24, 0
      %p65 = por %p63, %p64
      %p66 = scmp.ne.s32.totalorder %s55, %s58
      %p67 = scmp.eq.s32.totalorder %s29, 1
      %p68 = por %p66, %p67
      %p69 = scmp.ne.s32.totalorder %s58, %s59
      %p70 = scmp.eq.s32.totalorder %s29, 0
      %p71 = por %p69, %p70
      %p72 = scmp.ne.s32.totalorder %s58, %s59
      %p73 = scmp.eq.s32.totalorder %s30, 1
      %p74 = por %p72, %p73
      %p76 = scmp.ne.s32.totalorder %s59, %s75
      %p77 = scmp.eq.s32.totalorder %s30, 0
      %p78 = por %p76, %p77
      %s79 = ssub.s32 %s31, %s50
      %s80 = ssub.s32 %s33, %s42
      %s81 = sor.u32 %s79, %s80
      %p82 = scmp.eq.s32.totalorder %s81, 0
      %s84 = sadd.s32 %s83, 1
      %s85 = scalar_select %p82, %s83, %s84
      %p88 = pneg %p82
      %p89 = scmp.eq.s32.totalorder %s24, 1
      %p90 = por %p88, %p89
      %p91 = scmp.ne.s32.totalorder %s83, %s86
      %p92 = scmp.eq.s32.totalorder %s24, 0
      %p93 = por %p91, %p92
      %p94 = scmp.ne.s32.totalorder %s83, %s86
      %p95 = scmp.eq.s32.totalorder %s29, 1
      %p96 = por %p94, %p95
      %p97 = scmp.ne.s32.totalorder %s86, %s87
      %p98 = scmp.eq.s32.totalorder %s29, 0
      %p99 = por %p97, %p98
      %p100 = scmp.ne.s32.totalorder %s86, %s87
      %p101 = scmp.eq.s32.totalorder %s30, 1
      %p102 = por %p100, %p101
      %p104 = scmp.ne.s32.totalorder %s87, %s103
      %p105 = scmp.eq.s32.totalorder %s30, 0
      %p106 = por %p104, %p105
      %s107 = ssub.s32 %s31, %s50
      %s108 = ssub.s32 %s32, %s46
      %s109 = sor.u32 %s107, %s108
      %s110 = ssub.s32 %s33, %s42
      %s111 = sor.u32 %s109, %s110
      %p112 = scmp.eq.s32.totalorder %s111, 0
      %s114 = sadd.s32 %s113, 1
      %s115 = scalar_select %p112, %s113, %s114
      %p118 = pneg %p112
      %p119 = scmp.eq.s32.totalorder %s24, 1
      %p120 = por %p118, %p119
      %p121 = scmp.ne.s32.totalorder %s113, %s116
      %p122 = scmp.eq.s32.totalorder %s24, 0
      %p123 = por %p121, %p122
      %p124 = scmp.ne.s32.totalorder %s113, %s116
      %p125 = scmp.eq.s32.totalorder %s29, 1
      %p126 = por %p124, %p125
      %p127 = scmp.ne.s32.totalorder %s116, %s117
      %p128 = scmp.eq.s32.totalorder %s29, 0
      %p129 = por %p127, %p128
      %p130 = scmp.ne.s32.totalorder %s116, %s117
      %p131 = scmp.eq.s32.totalorder %s30, 1
      %p132 = por %p130, %p131
      %p134 = scmp.ne.s32.totalorder %s117, %s133
      %p135 = scmp.eq.s32.totalorder %s30, 0
      %p136 = por %p134, %p135
      %s138 = sadd.s32 %s137, 1
      %p141 = scmp.eq.s32.totalorder %s24, 1
      %p142 = scmp.ne.s32.totalorder %s137, %s139
      %p143 = scmp.eq.s32.totalorder %s24, 0
      %p144 = por %p142, %p143
      %p145 = scmp.ne.s32.totalorder %s137, %s139
      %p146 = scmp.eq.s32.totalorder %s29, 1
      %p147 = por %p145, %p146
      %p148 = scmp.ne.s32.totalorder %s139, %s140
      %p149 = scmp.eq.s32.totalorder %s29, 0
      %p150 = por %p148, %p149
      %p151 = scmp.ne.s32.totalorder %s139, %s140
      %p152 = scmp.eq.s32.totalorder %s30, 1
      %p153 = por %p151, %p152
      %p155 = scmp.ne.s32.totalorder %s140, %s154
      %p156 = scmp.eq.s32.totalorder %s30, 0
      %p157 = por %p155, %p156
      %s159 = sadd.s32 %s158, 1
      %p162 = scmp.eq.s32.totalorder %s24, 1
      %p163 = scmp.ne.s32.totalorder %s158, %s160
      %p164 = scmp.eq.s32.totalorder %s24, 0
      %p165 = por %p163, %p164
      %p166 = scmp.ne.s32.totalorder %s158, %s160
      %p167 = scmp.eq.s32.totalorder %s29, 1
      %p168 = por %p166, %p167
      %p169 = scmp.ne.s32.totalorder %s160, %s161
      %p170 = scmp.eq.s32.totalorder %s29, 0
      %p171 = por %p169, %p170
      %p172 = scmp.ne.s32.totalorder %s160, %s161
      %p173 = scmp.eq.s32.totalorder %s30, 1
      %p174 = por %p172, %p173
      %p176 = scmp.ne.s32.totalorder %s161, %s175
      %p177 = scmp.eq.s32.totalorder %s30, 0
      %p178 = por %p176, %p177
      %s180 = sadd.s32 %s179, 1
      %p183 = scmp.eq.s32.totalorder %s24, 1
      %p184 = scmp.ne.s32.totalorder %s179, %s181
      %p185 = scmp.eq.s32.totalorder %s24, 0
      %p186 = por %p184, %p185
      %p187 = scmp.ne.s32.totalorder %s179, %s181
      %p188 = scmp.eq.s32.totalorder %s29, 1
      %p189 = por %p187, %p188
      %p190 = scmp.ne.s32.totalorder %s181, %s182
      %p191 = scmp.eq.s32.totalorder %s29, 0
      %p192 = por %p190, %p191
      %p193 = scmp.ne.s32.totalorder %s181, %s182
      %p194 = scmp.eq.s32.totalorder %s30, 1
      %p195 = por %p193, %p194
      %p197 = scmp.ne.s32.totalorder %s182, %s196
      %p198 = scmp.eq.s32.totalorder %s30, 0
      %p199 = por %p197, %p198
      %s201 = sadd.s32 %s200, 1
      %p204 = scmp.eq.s32.totalorder %s24, 1
      %p205 = scmp.ne.s32.totalorder %s200, %s202
      %p206 = scmp.eq.s32.totalorder %s24, 0
      %p207 = por %p205, %p206
      %p208 = scmp.ne.s32.totalorder %s200, %s202
      %p209 = scmp.eq.s32.totalorder %s29, 1
      %p210 = por %p208, %p209
      %p211 = scmp.ne.s32.totalorder %s202, %s203
      %p212 = scmp.eq.s32.totalorder %s29, 0
      %p213 = por %p211, %p212
      %p214 = scmp.ne.s32.totalorder %s202, %s203
      %p215 = scmp.eq.s32.totalorder %s30, 1
      %p216 = por %p214, %p215
      %p218 = scmp.ne.s32.totalorder %s203, %s217
      %p219 = scmp.eq.s32.totalorder %s30, 0
      %p220 = por %p218, %p219
      %s222 = sadd.s32 %s221, 1
      %p225 = scmp.eq.s32.totalorder %s24, 1
      %p226 = scmp.ne.s32.totalorder %s221, %s223
      %p227 = scmp.eq.s32.totalorder %s24, 0
      %p228 = por %p226, %p227
      %p229 = scmp.ne.s32.totalorder %s221, %s223
      %p230 = scmp.eq.s32.totalorder %s29, 1
      %p231 = por %p229, %p230
      %p232 = scmp.ne.s32.totalorder %s223, %s224
      %p233 = scmp.eq.s32.totalorder %s29, 0
      %p234 = por %p232, %p233
      %p235 = scmp.ne.s32.totalorder %s223, %s224
      %p236 = scmp.eq.s32.totalorder %s30, 1
      %p237 = por %p235, %p236
      %p239 = scmp.ne.s32.totalorder %s224, %s238
      %p240 = scmp.eq.s32.totalorder %s30, 0
      %p241 = por %p239, %p240
      %s242 = ssub.s32 %s31, %s50
      %s243 = ssub.s32 %s32, %s46
      %s244 = sor.u32 %s242, %s243
      %s245 = ssub.s32 %s33, %s42
      %s246 = sor.u32 %s244, %s245
      %p247 = scmp.eq.s32.totalorder %s246, 0
      %s249 = sadd.s32 %s248, 1
      %s250 = scalar_select %p247, %s248, %s249
      %p253 = pneg %p247
      %p254 = scmp.eq.s32.totalorder %s24, 1
      %p255 = por %p253, %p254
      %p256 = scmp.ne.s32.totalorder %s248, %s251
      %p257 = scmp.eq.s32.totalorder %s24, 0
      %p258 = por %p256, %p257
      %p259 = scmp.ne.s32.totalorder %s248, %s251
      %p260 = scmp.eq.s32.totalorder %s29, 1
      %p261 = por %p259, %p260
      %p262 = scmp.ne.s32.totalorder %s251, %s252
      %p263 = scmp.eq.s32.totalorder %s29, 0
      %p264 = por %p262, %p263
      %p265 = scmp.ne.s32.totalorder %s251, %s252
      %p266 = scmp.eq.s32.totalorder %s30, 1
      %p267 = por %p265, %p266
      %p269 = scmp.ne.s32.totalorder %s252, %s268
      %p270 = scmp.eq.s32.totalorder %s30, 0
      %p271 = por %p269, %p270
      %p272 = scmp.le.s32.totalorder 1, %s24
      %p273 = scmp.lt.s32.totalorder %s24, 3
      %p274 = pnand %p272, %p273
      %p275 = pneg %p274
      // Predicated region
      $region9: #{tpu_custom_call.1} parent=5 // pred_check
        _
      $region10: #{tpu_custom_call.1} parent=5 // pred_check_branch
        %277 = sbr.rel (%p274) target = $region12
      $region11: #{tpu_custom_call.1} parent=5 // pred_region
        %s278 = ssub.s32 %s24, 1
        // Predicated region
        $region13: #{tpu_custom_call.1} parent=11 // pred_check
          %p279 = pneg %p150
        $region14: #{tpu_custom_call.1} parent=11 // pred_check_branch
          %281 = sbr.rel (%p279) target = $region16
        $region15: #{tpu_custom_call.1} parent=11 // pred_region
          %283 = vsyncadd [#allocation10], 0
          %s284 = sshll.u32 %s3, 4
          %s285 = int_to_ptr.hbm [resolvable:$true] %s284
          %s286 = sshll.u32 [#allocation9], 4
          %s287 = int_to_ptr.vmem [resolvable:$true] %s286
          %292 = dma.hbm_to_vmem [thread:$0]  %s285, 512, %s287, [#allocation10], 128, 128, 8
        $region16: #{tpu_custom_call.1} parent=11 // pred_fallthru
          _
        // Predicated region
        $region17: #{tpu_custom_call.1} parent=11 // pred_check
          %p293 = pneg %p171
        $region18: #{tpu_custom_call.1} parent=11 // pred_check_branch
          %295 = sbr.rel (%p293) target = $region20
        $region19: #{tpu_custom_call.1} parent=11 // pred_region
          _
        $region20: #{tpu_custom_call.1} parent=11 // pred_fallthru
          _
        // Predicated region
        $region21: #{tpu_custom_call.1} parent=11 // pred_check
          %p296 = pneg %p192
        $region22: #{tpu_custom_call.1} parent=11 // pred_check_branch
          %298 = sbr.rel (%p296) target = $region24
        $region23: #{tpu_custom_call.1} parent=11 // pred_region
          %300 = vsyncadd [#allocation10], 0
          %s301 = sshll.u32 %s5, 4
          %s302 = int_to_ptr.hbm [resolvable:$true] %s301
          %s303 = sshll.u32 [#allocation11], 4
          %s304 = int_to_ptr.vmem [resolvable:$true] %s303
          %309 = dma.hbm_to_vmem [thread:$0]  %s302, 512, %s304, [#allocation10], 128, 128, 8
        $region24: #{tpu_custom_call.1} parent=11 // pred_fallthru
          _
        // Predicated region
        $region25: #{tpu_custom_call.1} parent=11 // pred_check
          %p310 = pneg %p213
        $region26: #{tpu_custom_call.1} parent=11 // pred_check_branch
          %312 = sbr.rel (%p310) target = $region28
        $region27: #{tpu_custom_call.1} parent=11 // pred_region
          _
        $region28: #{tpu_custom_call.1} parent=11 // pred_fallthru
          _
        // Predicated region
        $region29: #{tpu_custom_call.1} parent=11 // pred_check
          %p313 = pneg %p234
        $region30: #{tpu_custom_call.1} parent=11 // pred_check_branch
          %315 = sbr.rel (%p313) target = $region32
        $region31: #{tpu_custom_call.1} parent=11 // pred_region
          _
        $region32: #{tpu_custom_call.1} parent=11 // pred_fallthru
          _
      $region12: #{tpu_custom_call.1} parent=5 // pred_fallthru
        _
      %p316 = scmp.lt.s32.totalorder %s24, 2
      // Predicated region
      $region33: #{tpu_custom_call.1} parent=5 // pred_check
        %p317 = pneg %p316
      $region34: #{tpu_custom_call.1} parent=5 // pred_check_branch
        %319 = sbr.rel (%p317) target = $region36
      $region35: #{tpu_custom_call.1} parent=5 // pred_region
        // Predicated region
        $region37: #{tpu_custom_call.1} parent=35 // pred_check
          %p320 = pneg %p65
        $region38: #{tpu_custom_call.1} parent=35 // pred_check_branch
          %322 = sbr.rel (%p320) target = $region40
        $region39: #{tpu_custom_call.1} parent=35 // pred_region
          %s323 = sand.u32 %s55, 1
          %s324 = scalar_lea.sflag [#allocation4], %s323
          %s325 = sand.u32 %s55, 1
          %s326 = smul.addr %s325, 8
          %s327 = scalar_lea.vmem [#allocation3], %s326
          %329 = vsyncadd %s324, 0
          %s330 = sadd.s32 %s32, %s31
          %s331 = smul.addr %s330, 8
          %s332 = scalar_lea.hbm %s0, %s331
          %s334 = sshll.u32 %s332, 4
          %s335 = int_to_ptr.hbm [resolvable:$true] %s334
          %s336 = sshll.u32 %s327, 4
          %s337 = int_to_ptr.vmem [resolvable:$true] %s336
          %339 = dma.hbm_to_vmem [thread:$0]  %s335, 128, %s337, %s324
        $region40: #{tpu_custom_call.1} parent=35 // pred_fallthru
          _
        // Predicated region
        $region41: #{tpu_custom_call.1} parent=35 // pred_check
          %p340 = pneg %p93
        $region42: #{tpu_custom_call.1} parent=35 // pred_check_branch
          %342 = sbr.rel (%p340) target = $region44
        $region43: #{tpu_custom_call.1} parent=35 // pred_region
          %s343 = sand.u32 %s24, 1
          %s344 = scalar_lea.sflag [#allocation7], %s343
          %s345 = sand.u32 %s83, 1
          %s346 = smul.addr %s345, 8
          %s347 = scalar_lea.vmem [#allocation6], %s346
          %349 = vsyncadd %s344, 0
          %s350 = sadd.s32 %s33, %s31
          %s351 = smul.addr %s350, 8
          %s352 = scalar_lea.hbm %s1, %s351
          %s354 = sshll.u32 %s352, 4
          %s355 = int_to_ptr.hbm [resolvable:$true] %s354
          %s356 = sshll.u32 %s347, 4
          %s357 = int_to_ptr.vmem [resolvable:$true] %s356
          %359 = dma.hbm_to_vmem [thread:$0]  %s355, 128, %s357, %s344
        $region44: #{tpu_custom_call.1} parent=35 // pred_fallthru
          _
        // Predicated region
        $region45: #{tpu_custom_call.1} parent=35 // pred_check
          %p360 = pneg %p123
        $region46: #{tpu_custom_call.1} parent=35 // pred_check_branch
          %362 = sbr.rel (%p360) target = $region48
        $region47: #{tpu_custom_call.1} parent=35 // pred_region
          %s363 = sand.u32 %s24, 1
          %s364 = scalar_lea.sflag [#allocation7], %s363
          %s365 = sand.u32 %s113, 1
          %s366 = smul.addr %s365, 16
          %s367 = scalar_lea.vmem [#allocation8], %s366
          %369 = vsyncadd %s364, 0
          %s370 = sadd.s32 %s33, %s32
          %s371 = smul.addr %s31, 2
          %s372 = sadd.s32 %s370, %s371
          %s373 = smul.addr %s372, 8
          %s374 = scalar_lea.hbm %s2, %s373
          %s375 = sshll.u32 %s374, 4
          %s376 = int_to_ptr.hbm [resolvable:$true] %s375
          %s377 = sshll.u32 %s367, 4
          %s378 = int_to_ptr.vmem [resolvable:$true] %s377
          %383 = dma.hbm_to_vmem [thread:$0]  %s376, 256, %s378, %s364, 128, 128, 8
        $region48: #{tpu_custom_call.1} parent=35 // pred_fallthru
          _
      $region36: #{tpu_custom_call.1} parent=5 // pred_fallthru
        _
      %p384 = scmp.le.s32.totalorder 1, %s24
      %p385 = scmp.lt.s32.totalorder %s24, 3
      %p386 = pnand %p384, %p385
      %p387 = pneg %p386
      // Predicated region
      $region49: #{tpu_custom_call.1} parent=5 // pred_check
        _
      $region50: #{tpu_custom_call.1} parent=5 // pred_check_branch
        %389 = sbr.rel (%p386) target = $region52
      $region51: #{tpu_custom_call.1} parent=5 // pred_region
        %s390 = ssub.s32 %s24, 1
        %s391 = sand.u32 %s58, 1
        %s392 = scalar_lea.sflag [#allocation4], %s391
        %s393 = sand.u32 %s58, 1
        %s394 = smul.addr %s393, 8
        %s395 = scalar_lea.vmem [#allocation3], %s394
        // Predicated region
        $region53: #{tpu_custom_call.1} parent=51 // pred_check
          %p396 = pneg %p71
        $region54: #{tpu_custom_call.1} parent=51 // pred_check_branch
          %398 = sbr.rel (%p396) target = $region56
        $region55: #{tpu_custom_call.1} parent=51 // pred_region
          %400 = dma.done %s392, 128
        $region56: #{tpu_custom_call.1} parent=51 // pred_fallthru
          _
        %s401 = sand.u32 %s29, 1
        %s402 = scalar_lea.sflag [#allocation7], %s401
        %s403 = sand.u32 %s86, 1
        %s404 = smul.addr %s403, 8
        %s405 = scalar_lea.vmem [#allocation6], %s404
        // Predicated region
        $region57: #{tpu_custom_call.1} parent=51 // pred_check
          %p406 = pneg %p99
        $region58: #{tpu_custom_call.1} parent=51 // pred_check_branch
          %408 = sbr.rel (%p406) target = $region60
        $region59: #{tpu_custom_call.1} parent=51 // pred_region
          %410 = dma.done %s402, 128
        $region60: #{tpu_custom_call.1} parent=51 // pred_fallthru
          _
        %s411 = sand.u32 %s29, 1
        %s412 = scalar_lea.sflag [#allocation7], %s411
        %s413 = sand.u32 %s116, 1
        %s414 = smul.addr %s413, 16
        %s415 = scalar_lea.vmem [#allocation8], %s414
        // Predicated region
        $region61: #{tpu_custom_call.1} parent=51 // pred_check
          %p416 = pneg %p129
        $region62: #{tpu_custom_call.1} parent=51 // pred_check_branch
          %418 = sbr.rel (%p416) target = $region64
        $region63: #{tpu_custom_call.1} parent=51 // pred_region
          %420 = dma.done %s412, 256
        $region64: #{tpu_custom_call.1} parent=51 // pred_fallthru
          _
        // Predicated region
        $region65: #{tpu_custom_call.1} parent=51 // pred_check
          %p421 = pneg %p150
        $region66: #{tpu_custom_call.1} parent=51 // pred_check_branch
          %423 = sbr.rel (%p421) target = $region68
        $region67: #{tpu_custom_call.1} parent=51 // pred_region
          %425 = dma.done [#allocation10], 512
        $region68: #{tpu_custom_call.1} parent=51 // pred_fallthru
          _
        // Predicated region
        $region69: #{tpu_custom_call.1} parent=51 // pred_check
          %p426 = pneg %p192
        $region70: #{tpu_custom_call.1} parent=51 // pred_check_branch
          %428 = sbr.rel (%p426) target = $region72
        $region71: #{tpu_custom_call.1} parent=51 // pred_region
          %430 = dma.done [#allocation10], 512
        $region72: #{tpu_custom_call.1} parent=51 // pred_fallthru
          _
        %s431 = sand.u32 %s58, 1
        %s432 = scalar_lea.sflag [#allocation4], %s431
        %s433 = sand.u32 %s58, 1
        %s434 = smul.addr %s433, 8
        %s435 = scalar_lea.vmem [#allocation3], %s434
        %p436 = pneg %p71
        %p437 = pneg %p68
        %s438 = sand.u32 %s29, 1
        %s439 = scalar_lea.sflag [#allocation7], %s438
        %s440 = sand.u32 %s86, 1
        %s441 = smul.addr %s440, 8
        %s442 = scalar_lea.vmem [#allocation6], %s441
        %p443 = pneg %p99
        %p444 = pneg %p96
        %s445 = sand.u32 %s29, 1
        %s446 = scalar_lea.sflag [#allocation7], %s445
        %s447 = sand.u32 %s116, 1
        %s448 = smul.addr %s447, 16
        %s449 = scalar_lea.vmem [#allocation8], %s448
        %p450 = pneg %p129
        %p451 = pneg %p126
        %p452 = pneg %p150
        %p453 = pneg %p147
        %p454 = pneg %p171
        %p455 = pneg %p168
        %p456 = pneg %p192
        %p457 = pneg %p189
        %p458 = pneg %p213
        %p459 = pneg %p210
        %p460 = pneg %p234
        %p461 = pneg %p231
        %p462 = pneg %p264
        %p463 = pneg %p261
        %s464 = sand.u32 %s251, 1
        %s465 = scalar_lea.sflag [#allocation5], %s464
        %s466 = sand.u32 %s251, 1
        %s467 = smul.addr %s466, 16
        %s468 = scalar_lea.vmem [#allocation12], %s467
        %v469 = vld [vmem:[%s395] sm:$0xff]
        %v470 = vld [vmem:[%s405] sm:$0xff]
        %v471 = vld [vmem:[%s7] sm:$0x1]
        %v472 = vld [vmem:[#allocation9] sm:$0xff]
        %v473 = vld [vmem:[#allocation9 + $0x8] sm:$0xff]
        %v474 = vld [vmem:[%s4] sm:$0x1]
        %v476 = vperm.slane %v474, 0
        %vm478 = vcmask 130048
        %v480 = vsel %vm478, %v469, 0
        %482 = vmatpush.msra.mxu0 0.0
        %483 = vmatpush.msra.mxu0 0.0
        %484 = vmatpush.msra.mxu0 0.0
        %485 = vmatpush.msra.mxu0 0.0
        %486 = vmatpush.msra.mxu0 0.0
        %487 = vmatpush.msra.mxu0 0.0
        %488 = vmatpush.msra.mxu0 0.0
        %489 = vmatpush.msra.mxu0 0.0
        %490 = vmatpush.msra.mxu0 0.0
        %491 = vmatpush.msra.mxu0 0.0
        %492 = vmatpush.msra.mxu0 0.0
        %493 = vmatpush.msra.mxu0 0.0
        %494 = vmatpush.msra.mxu0 0.0
        %495 = vmatpush.msra.mxu0 0.0
        %v496 = vand.u32 %v473, 4294901760
        %497 = vmatpush.msra.mxu0 %v496
        %v498 = vand.u32 %v472, 4294901760
        %499 = vmatpush.msra.mxu0 %v498
        %v500 = vand.u32 %v480, 4294901760
        %v501 = vsub.f32 %v480, %v500
        %v502 = vand.u32 %v501, 4294901760
        %v503 = vsub.f32 %v501, %v502
        %v504 = vand.u32 %v503, 4294901760
        %505 = vmatmul.f32.gmra.mxu0 %v504
        %v506 = vpop.f32.mrf.mxu0
        %v507 = vadd.f32 %v476, %v506
        %508 = vdwg.mxu0
        %509 = vmatpush.msra.mxu0 0.0
        %510 = vmatpush.msra.mxu0 0.0
        %511 = vmatpush.msra.mxu0 0.0
        %512 = vmatpush.msra.mxu0 0.0
        %513 = vmatpush.msra.mxu0 0.0
        %514 = vmatpush.msra.mxu0 0.0
        %515 = vmatpush.msra.mxu0 0.0
        %516 = vmatpush.msra.mxu0 0.0
        %517 = vmatpush.msra.mxu0 0.0
        %518 = vmatpush.msra.mxu0 0.0
        %519 = vmatpush.msra.mxu0 0.0
        %520 = vmatpush.msra.mxu0 0.0
        %521 = vmatpush.msra.mxu0 0.0
        %522 = vmatpush.msra.mxu0 0.0
        %v523 = vand.u32 %v473, 4294901760
        %v524 = vsub.f32 %v473, %v523
        %v525 = vand.u32 %v524, 4294901760
        %v526 = vsub.f32 %v524, %v525
        %v527 = vand.u32 %v526, 4294901760
        %528 = vmatpush.msra.mxu0 %v527
        %v529 = vand.u32 %v472, 4294901760
        %v530 = vsub.f32 %v472, %v529
        %v531 = vand.u32 %v530, 4294901760
        %v532 = vsub.f32 %v530, %v531
        %v533 = vand.u32 %v532, 4294901760
        %534 = vmatpush.msra.mxu0 %v533
        %v535 = vand.u32 %v480, 4294901760
        %536 = vmatmul.f32.gmra.mxu0 %v535
        %v537 = vpop.f32.mrf.mxu0
        %v538 = vadd.f32 %v507, %v537
        %539 = vdwg.mxu0
        %540 = vmatpush.msra.mxu0 0.0
        %541 = vmatpush.msra.mxu0 0.0
        %542 = vmatpush.msra.mxu0 0.0
        %543 = vmatpush.msra.mxu0 0.0
        %544 = vmatpush.msra.mxu0 0.0
        %545 = vmatpush.msra.mxu0 0.0
        %546 = vmatpush.msra.mxu0 0.0
        %547 = vmatpush.msra.mxu0 0.0
        %548 = vmatpush.msra.mxu0 0.0
        %549 = vmatpush.msra.mxu0 0.0
        %550 = vmatpush.msra.mxu0 0.0
        %551 = vmatpush.msra.mxu0 0.0
        %552 = vmatpush.msra.mxu0 0.0
        %553 = vmatpush.msra.mxu0 0.0
        %v554 = vand.u32 %v473, 4294901760
        %v555 = vsub.f32 %v473, %v554
        %556 = vmatpush.msra.mxu0 %v555
        %v557 = vand.u32 %v472, 4294901760
        %v558 = vsub.f32 %v472, %v557
        %559 = vmatpush.msra.mxu0 %v558
        %v560 = vand.u32 %v480, 4294901760
        %v561 = vsub.f32 %v480, %v560
        %562 = vmatmul.f32.gmra.mxu0 %v561
        %v563 = vpop.f32.mrf.mxu0
        %v564 = vadd.f32 %v538, %v563
        %565 = vdwg.mxu0
        %566 = vmatpush.msra.mxu0 0.0
        %567 = vmatpush.msra.mxu0 0.0
        %568 = vmatpush.msra.mxu0 0.0
        %569 = vmatpush.msra.mxu0 0.0
        %570 = vmatpush.msra.mxu0 0.0
        %571 = vmatpush.msra.mxu0 0.0
        %572 = vmatpush.msra.mxu0 0.0
        %573 = vmatpush.msra.mxu0 0.0
        %574 = vmatpush.msra.mxu0 0.0
        %575 = vmatpush.msra.mxu0 0.0
        %576 = vmatpush.msra.mxu0 0.0
        %577 = vmatpush.msra.mxu0 0.0
        %578 = vmatpush.msra.mxu0 0.0
        %579 = vmatpush.msra.mxu0 0.0
        %v580 = vand.u32 %v473, 4294901760
        %581 = vmatpush.msra.mxu0 %v580
        %v582 = vand.u32 %v472, 4294901760
        %583 = vmatpush.msra.mxu0 %v582
        %v584 = vand.u32 %v480, 4294901760
        %v585 = vsub.f32 %v480, %v584
        %v586 = vand.u32 %v585, 4294901760
        %587 = vmatmul.f32.gmra.mxu0 %v586
        %v588 = vpop.f32.mrf.mxu0
        %v589 = vadd.f32 %v564, %v588
        %590 = vdwg.mxu0
        %591 = vmatpush.msra.mxu0 0.0
        %592 = vmatpush.msra.mxu0 0.0
        %593 = vmatpush.msra.mxu0 0.0
        %594 = vmatpush.msra.mxu0 0.0
        %595 = vmatpush.msra.mxu0 0.0
        %596 = vmatpush.msra.mxu0 0.0
        %597 = vmatpush.msra.mxu0 0.0
        %598 = vmatpush.msra.mxu0 0.0
        %599 = vmatpush.msra.mxu0 0.0
        %600 = vmatpush.msra.mxu0 0.0
        %601 = vmatpush.msra.mxu0 0.0
        %602 = vmatpush.msra.mxu0 0.0
        %603 = vmatpush.msra.mxu0 0.0
        %604 = vmatpush.msra.mxu0 0.0
        %v605 = vand.u32 %v473, 4294901760
        %v606 = vsub.f32 %v473, %v605
        %v607 = vand.u32 %v606, 4294901760
        %608 = vmatpush.msra.mxu0 %v607
        %v609 = vand.u32 %v472, 4294901760
        %v610 = vsub.f32 %v472, %v609
        %v611 = vand.u32 %v610, 4294901760
        %612 = vmatpush.msra.mxu0 %v611
        %v613 = vand.u32 %v480, 4294901760
        %614 = vmatmul.f32.gmra.mxu0 %v613
        %v615 = vpop.f32.mrf.mxu0
        %v616 = vadd.f32 %v589, %v615
        %617 = vdwg.mxu0
        %618 = vmatpush.msra.mxu0 0.0
        %619 = vmatpush.msra.mxu0 0.0
        %620 = vmatpush.msra.mxu0 0.0
        %621 = vmatpush.msra.mxu0 0.0
        %622 = vmatpush.msra.mxu0 0.0
        %623 = vmatpush.msra.mxu0 0.0
        %624 = vmatpush.msra.mxu0 0.0
        %625 = vmatpush.msra.mxu0 0.0
        %626 = vmatpush.msra.mxu0 0.0
        %627 = vmatpush.msra.mxu0 0.0
        %628 = vmatpush.msra.mxu0 0.0
        %629 = vmatpush.msra.mxu0 0.0
        %630 = vmatpush.msra.mxu0 0.0
        %631 = vmatpush.msra.mxu0 0.0
        %v632 = vand.u32 %v473, 4294901760
        %633 = vmatpush.msra.mxu0 %v632
        %v634 = vand.u32 %v472, 4294901760
        %635 = vmatpush.msra.mxu0 %v634
        %v636 = vand.u32 %v480, 4294901760
        %637 = vmatmul.f32.gmra.mxu0 %v636
        %v638 = vpop.f32.mrf.mxu0
        %v639 = vadd.f32 %v616, %v638
        %640 = vdwg.mxu0
        %vm641 = vcmask 261120
        %642 = vst.msk [vmem:[#allocation2] sm:$0xff] %vm641, %v639
        %v643 = vld [vmem:[#allocation11] sm:$0xff]
        %v644 = vld [vmem:[#allocation11 + $0x8] sm:$0xff]
        %v645 = vld [vmem:[%s6] sm:$0x1]
        %v647 = vperm.slane %v645, 0
        %v650 = vsel %vm478, %v470, 0
        %652 = vmatpush.msra.mxu0 0.0
        %653 = vmatpush.msra.mxu0 0.0
        %654 = vmatpush.msra.mxu0 0.0
        %655 = vmatpush.msra.mxu0 0.0
        %656 = vmatpush.msra.mxu0 0.0
        %657 = vmatpush.msra.mxu0 0.0
        %658 = vmatpush.msra.mxu0 0.0
        %659 = vmatpush.msra.mxu0 0.0
        %660 = vmatpush.msra.mxu0 0.0
        %661 = vmatpush.msra.mxu0 0.0
        %662 = vmatpush.msra.mxu0 0.0
        %663 = vmatpush.msra.mxu0 0.0
        %664 = vmatpush.msra.mxu0 0.0
        %665 = vmatpush.msra.mxu0 0.0
        %v666 = vand.u32 %v644, 4294901760
        %667 = vmatpush.msra.mxu0 %v666
        %v668 = vand.u32 %v643, 4294901760
        %669 = vmatpush.msra.mxu0 %v668
        %v670 = vand.u32 %v650, 4294901760
        %v671 = vsub.f32 %v650, %v670
        %v672 = vand.u32 %v671, 4294901760
        %v673 = vsub.f32 %v671, %v672
        %v674 = vand.u32 %v673, 4294901760
        %675 = vmatmul.f32.gmra.mxu0 %v674
        %v676 = vpop.f32.mrf.mxu0
        %v677 = vadd.f32 %v647, %v676
        %678 = vdwg.mxu0
        %679 = vmatpush.msra.mxu0 0.0
        %680 = vmatpush.msra.mxu0 0.0
        %681 = vmatpush.msra.mxu0 0.0
        %682 = vmatpush.msra.mxu0 0.0
        %683 = vmatpush.msra.mxu0 0.0
        %684 = vmatpush.msra.mxu0 0.0
        %685 = vmatpush.msra.mxu0 0.0
        %686 = vmatpush.msra.mxu0 0.0
        %687 = vmatpush.msra.mxu0 0.0
        %688 = vmatpush.msra.mxu0 0.0
        %689 = vmatpush.msra.mxu0 0.0
        %690 = vmatpush.msra.mxu0 0.0
        %691 = vmatpush.msra.mxu0 0.0
        %692 = vmatpush.msra.mxu0 0.0
        %v693 = vand.u32 %v644, 4294901760
        %v694 = vsub.f32 %v644, %v693
        %v695 = vand.u32 %v694, 4294901760
        %v696 = vsub.f32 %v694, %v695
        %v697 = vand.u32 %v696, 4294901760
        %698 = vmatpush.msra.mxu0 %v697
        %v699 = vand.u32 %v643, 4294901760
        %v700 = vsub.f32 %v643, %v699
        %v701 = vand.u32 %v700, 4294901760
        %v702 = vsub.f32 %v700, %v701
        %v703 = vand.u32 %v702, 4294901760
        %704 = vmatpush.msra.mxu0 %v703
        %v705 = vand.u32 %v650, 4294901760
        %706 = vmatmul.f32.gmra.mxu0 %v705
        %v707 = vpop.f32.mrf.mxu0
        %v708 = vadd.f32 %v677, %v707
        %709 = vdwg.mxu0
        %710 = vmatpush.msra.mxu0 0.0
        %711 = vmatpush.msra.mxu0 0.0
        %712 = vmatpush.msra.mxu0 0.0
        %713 = vmatpush.msra.mxu0 0.0
        %714 = vmatpush.msra.mxu0 0.0
        %715 = vmatpush.msra.mxu0 0.0
        %716 = vmatpush.msra.mxu0 0.0
        %717 = vmatpush.msra.mxu0 0.0
        %718 = vmatpush.msra.mxu0 0.0
        %719 = vmatpush.msra.mxu0 0.0
        %720 = vmatpush.msra.mxu0 0.0
        %721 = vmatpush.msra.mxu0 0.0
        %722 = vmatpush.msra.mxu0 0.0
        %723 = vmatpush.msra.mxu0 0.0
        %v724 = vand.u32 %v644, 4294901760
        %v725 = vsub.f32 %v644, %v724
        %726 = vmatpush.msra.mxu0 %v725
        %v727 = vand.u32 %v643, 4294901760
        %v728 = vsub.f32 %v643, %v727
        %729 = vmatpush.msra.mxu0 %v728
        %v730 = vand.u32 %v650, 4294901760
        %v731 = vsub.f32 %v650, %v730
        %732 = vmatmul.f32.gmra.mxu0 %v731
        %v733 = vpop.f32.mrf.mxu0
        %v734 = vadd.f32 %v708, %v733
        %735 = vdwg.mxu0
        %736 = vmatpush.msra.mxu0 0.0
        %737 = vmatpush.msra.mxu0 0.0
        %738 = vmatpush.msra.mxu0 0.0
        %739 = vmatpush.msra.mxu0 0.0
        %740 = vmatpush.msra.mxu0 0.0
        %741 = vmatpush.msra.mxu0 0.0
        %742 = vmatpush.msra.mxu0 0.0
        %743 = vmatpush.msra.mxu0 0.0
        %744 = vmatpush.msra.mxu0 0.0
        %745 = vmatpush.msra.mxu0 0.0
        %746 = vmatpush.msra.mxu0 0.0
        %747 = vmatpush.msra.mxu0 0.0
        %748 = vmatpush.msra.mxu0 0.0
        %749 = vmatpush.msra.mxu0 0.0
        %v750 = vand.u32 %v644, 4294901760
        %751 = vmatpush.msra.mxu0 %v750
        %v752 = vand.u32 %v643, 4294901760
        %753 = vmatpush.msra.mxu0 %v752
        %v754 = vand.u32 %v650, 4294901760
        %v755 = vsub.f32 %v650, %v754
        %v756 = vand.u32 %v755, 4294901760
        %757 = vmatmul.f32.gmra.mxu0 %v756
        %v758 = vpop.f32.mrf.mxu0
        %v759 = vadd.f32 %v734, %v758
        %760 = vdwg.mxu0
        %761 = vmatpush.msra.mxu0 0.0
        %762 = vmatpush.msra.mxu0 0.0
        %763 = vmatpush.msra.mxu0 0.0
        %764 = vmatpush.msra.mxu0 0.0
        %765 = vmatpush.msra.mxu0 0.0
        %766 = vmatpush.msra.mxu0 0.0
        %767 = vmatpush.msra.mxu0 0.0
        %768 = vmatpush.msra.mxu0 0.0
        %769 = vmatpush.msra.mxu0 0.0
        %770 = vmatpush.msra.mxu0 0.0
        %771 = vmatpush.msra.mxu0 0.0
        %772 = vmatpush.msra.mxu0 0.0
        %773 = vmatpush.msra.mxu0 0.0
        %774 = vmatpush.msra.mxu0 0.0
        %v775 = vand.u32 %v644, 4294901760
        %v776 = vsub.f32 %v644, %v775
        %v777 = vand.u32 %v776, 4294901760
        %778 = vmatpush.msra.mxu0 %v777
        %v779 = vand.u32 %v643, 4294901760
        %v780 = vsub.f32 %v643, %v779
        %v781 = vand.u32 %v780, 4294901760
        %782 = vmatpush.msra.mxu0 %v781
        %v783 = vand.u32 %v650, 4294901760
        %784 = vmatmul.f32.gmra.mxu0 %v783
        %v785 = vpop.f32.mrf.mxu0
        %v786 = vadd.f32 %v759, %v785
        %787 = vdwg.mxu0
        %788 = vmatpush.msra.mxu0 0.0
        %789 = vmatpush.msra.mxu0 0.0
        %790 = vmatpush.msra.mxu0 0.0
        %791 = vmatpush.msra.mxu0 0.0
        %792 = vmatpush.msra.mxu0 0.0
        %793 = vmatpush.msra.mxu0 0.0
        %794 = vmatpush.msra.mxu0 0.0
        %795 = vmatpush.msra.mxu0 0.0
        %796 = vmatpush.msra.mxu0 0.0
        %797 = vmatpush.msra.mxu0 0.0
        %798 = vmatpush.msra.mxu0 0.0
        %799 = vmatpush.msra.mxu0 0.0
        %800 = vmatpush.msra.mxu0 0.0
        %801 = vmatpush.msra.mxu0 0.0
        %v802 = vand.u32 %v644, 4294901760
        %803 = vmatpush.msra.mxu0 %v802
        %v804 = vand.u32 %v643, 4294901760
        %805 = vmatpush.msra.mxu0 %v804
        %v806 = vand.u32 %v650, 4294901760
        %807 = vmatmul.f32.gmra.mxu0 %v806
        %v808 = vpop.f32.mrf.mxu0
        %v809 = vadd.f32 %v786, %v808
        %810 = vdwg.mxu0
        %v811 = vld [vmem:[#allocation2] sm:$0xff]
        %v813 = vrot.slane %v811, 1
        %v814 = vrot.slane %v811, 2
        %v815 = vrot.slane %v811, 3
        %v816 = vrot.slane %v811, 4
        %v817 = vrot.slane %v811, 5
        %v818 = vrot.slane %v811, 6
        %v819 = vrot.slane %v811, 7
        %v820 = vperm.slane %v811, 0
        %v821 = vperm.slane %v813, 0
        %v822 = vperm.slane %v814, 0
        %v823 = vperm.slane %v815, 0
        %v824 = vperm.slane %v816, 0
        %v825 = vperm.slane %v817, 0
        %v826 = vperm.slane %v818, 0
        %v827 = vperm.slane %v819, 0
        %v836 = vadd.f32 %v820, %v809
        %v837 = vadd.f32 %v821, %v809
        %v838 = vadd.f32 %v822, %v809
        %v839 = vadd.f32 %v823, %v809
        %v840 = vadd.f32 %v824, %v809
        %v841 = vadd.f32 %v825, %v809
        %v842 = vadd.f32 %v826, %v809
        %v843 = vadd.f32 %v827, %v809
        %v844 = vtanh.pop %v836
        %v845 = vtanh.pop %v837
        %v846 = vtanh.pop %v838
        %v847 = vtanh.pop %v839
        %v848 = vtanh.pop %v840
        %v849 = vtanh.pop %v841
        %v850 = vtanh.pop %v842
        %v851 = vtanh.pop %v843
        %v853 = vperm.slane %v471, 0
        %v855 = vmul.f32 %v844, %v853
        %v856 = vmul.f32 %v845, %v853
        %v857 = vmul.f32 %v846, %v853
        %v858 = vmul.f32 %v847, %v853
        %v859 = vmul.f32 %v848, %v853
        %v860 = vmul.f32 %v849, %v853
        %v861 = vmul.f32 %v850, %v853
        %v862 = vmul.f32 %v851, %v853
        %v863 = vsel %vm641, %v855, 0.0
        %864 = vadd.xlane.f32.xlu0 %v863
        %v865 = vpop.xlane.xlu0 %864
        %v866 = vsel %vm641, %v856, 0.0
        %867 = vadd.xlane.f32.xlu0 %v866
        %v868 = vpop.xlane.xlu0 %867
        %v869 = vsel %vm641, %v857, 0.0
        %870 = vadd.xlane.f32.xlu0 %v869
        %v871 = vpop.xlane.xlu0 %870
        %v872 = vsel %vm641, %v858, 0.0
        %873 = vadd.xlane.f32.xlu0 %v872
        %v874 = vpop.xlane.xlu0 %873
        %v875 = vsel %vm641, %v859, 0.0
        %876 = vadd.xlane.f32.xlu0 %v875
        %v877 = vpop.xlane.xlu0 %876
        %v878 = vsel %vm641, %v860, 0.0
        %879 = vadd.xlane.f32.xlu0 %v878
        %v880 = vpop.xlane.xlu0 %879
        %v881 = vsel %vm641, %v861, 0.0
        %882 = vadd.xlane.f32.xlu0 %v881
        %v883 = vpop.xlane.xlu0 %882
        %v884 = vsel %vm641, %v862, 0.0
        %885 = vadd.xlane.f32.xlu0 %v884
        %v886 = vpop.xlane.xlu0 %885
        %v887 = vld [vmem:[%s415] sm:$0xff]
        %v889 = vperm.slane %v887, 0
        %v890 = vlaneseq
        %v891 = vshrl.u32 %v890, 7
        %893 = vset.pattern.permute.xlu0 %v891
        %894 = vperm.xlu0 %893, %v889
        %v895 = vpop.permute.xlu0 %894
        %v896 = vperm.slane %v887, 1
        %v897 = vlaneseq
        %v898 = vshrl.u32 %v897, 7
        %900 = vset.pattern.permute.xlu0 %v898
        %901 = vperm.xlu0 %900, %v896
        %v902 = vpop.permute.xlu0 %901
        %v903 = vperm.slane %v887, 2
        %v904 = vlaneseq
        %v905 = vshrl.u32 %v904, 7
        %907 = vset.pattern.permute.xlu0 %v905
        %908 = vperm.xlu0 %907, %v903
        %v909 = vpop.permute.xlu0 %908
        %v910 = vperm.slane %v887, 3
        %v911 = vlaneseq
        %v912 = vshrl.u32 %v911, 7
        %914 = vset.pattern.permute.xlu0 %v912
        %915 = vperm.xlu0 %914, %v910
        %v916 = vpop.permute.xlu0 %915
        %v917 = vperm.slane %v887, 4
        %v918 = vlaneseq
        %v919 = vshrl.u32 %v918, 7
        %921 = vset.pattern.permute.xlu0 %v919
        %922 = vperm.xlu0 %921, %v917
        %v923 = vpop.permute.xlu0 %922
        %v924 = vperm.slane %v887, 5
        %v925 = vlaneseq
        %v926 = vshrl.u32 %v925, 7
        %928 = vset.pattern.permute.xlu0 %v926
        %929 = vperm.xlu0 %928, %v924
        %v930 = vpop.permute.xlu0 %929
        %v931 = vperm.slane %v887, 6
        %v932 = vlaneseq
        %v933 = vshrl.u32 %v932, 7
        %935 = vset.pattern.permute.xlu0 %v933
        %936 = vperm.xlu0 %935, %v931
        %v937 = vpop.permute.xlu0 %936
        %v938 = vperm.slane %v887, 7
        %v939 = vlaneseq
        %v940 = vshrl.u32 %v939, 7
        %942 = vset.pattern.permute.xlu0 %v940
        %943 = vperm.xlu0 %942, %v938
        %v944 = vpop.permute.xlu0 %943
        %v953 = vadd.f32 %v865, %v895
        %v954 = vadd.f32 %v868, %v902
        %v955 = vadd.f32 %v871, %v909
        %v956 = vadd.f32 %v874, %v916
        %v957 = vadd.f32 %v877, %v923
        %v958 = vadd.f32 %v880, %v930
        %v959 = vadd.f32 %v883, %v937
        %v960 = vadd.f32 %v886, %v944
        %v961 = vmul.f32 %v953, 100.0
        %v962 = vmul.f32 %v954, 100.0
        %v963 = vmul.f32 %v955, 100.0
        %v964 = vmul.f32 %v956, 100.0
        %v965 = vmul.f32 %v957, 100.0
        %v966 = vmul.f32 %v958, 100.0
        %v967 = vmul.f32 %v959, 100.0
        %v968 = vmul.f32 %v960, 100.0
        %v969 = vand.u32 2147483647, %v961
        %v970 = vand.u32 2147483647, %v962
        %v971 = vand.u32 2147483647, %v963
        %v972 = vand.u32 2147483647, %v964
        %v973 = vand.u32 2147483647, %v965
        %v974 = vand.u32 2147483647, %v966
        %v975 = vand.u32 2147483647, %v967
        %v976 = vand.u32 2147483647, %v968
        %v977 = vsub.f32 0.0, %v969
        %v978 = vsub.f32 0.0, %v970
        %v979 = vsub.f32 0.0, %v971
        %v980 = vsub.f32 0.0, %v972
        %v981 = vsub.f32 0.0, %v973
        %v982 = vsub.f32 0.0, %v974
        %v983 = vsub.f32 0.0, %v975
        %v984 = vsub.f32 0.0, %v976
        %v985 = vmul.f32 %v977, 1.442695
        %v986 = vpow.pop %v985
        %v987 = vmul.f32 %v978, 1.442695
        %v988 = vpow.pop %v987
        %v989 = vmul.f32 %v979, 1.442695
        %v990 = vpow.pop %v989
        %v991 = vmul.f32 %v980, 1.442695
        %v992 = vpow.pop %v991
        %v993 = vmul.f32 %v981, 1.442695
        %v994 = vpow.pop %v993
        %v995 = vmul.f32 %v982, 1.442695
        %v996 = vpow.pop %v995
        %v997 = vmul.f32 %v983, 1.442695
        %v998 = vpow.pop %v997
        %v999 = vmul.f32 %v984, 1.442695
        %v1000 = vpow.pop %v999
        %v1001 = vadd.f32 %v986, 1.0
        %v1002 = vadd.f32 %v988, 1.0
        %v1003 = vadd.f32 %v990, 1.0
        %v1004 = vadd.f32 %v992, 1.0
        %v1005 = vadd.f32 %v994, 1.0
        %v1006 = vadd.f32 %v996, 1.0
        %v1007 = vadd.f32 %v998, 1.0
        %v1008 = vadd.f32 %v1000, 1.0
        %v1009 = vrcp.pop %v1001
        %v1010 = vmul.f32 %v1001, %v1009
        %v1011 = vsub.f32 1.0, %v1010
        %v1012 = vmul.f32 %v1009, %v1011
        %v1013 = vadd.f32 %v1009, %v1012
        %vm1014 = vweird.f32 %v1001
        %vm1015 = vweird.f32 %v1009
        %vm1016 = vmor %vm1014, %vm1015
        %v1017 = vsel %vm1016, %v1009, %v1013
        %v1018 = vand.u32 2147483647, %v1001
        %vm1019 = vcmp.eq.f32.partialorder %v1018, 8.507059e+37
        %v1020 = vand.u32 %v1001, 2147483648
        %v1021 = vor.u32 1.1754944e-38, %v1020
        %v1022 = vsel %vm1019, %v1021, %v1017
        %v1023 = vmul.f32 1.0, %v1022
        %v1024 = vrcp.pop %v1002
        %v1025 = vmul.f32 %v1002, %v1024
        %v1026 = vsub.f32 1.0, %v1025
        %v1027 = vmul.f32 %v1024, %v1026
        %v1028 = vadd.f32 %v1024, %v1027
        %vm1029 = vweird.f32 %v1002
        %vm1030 = vweird.f32 %v1024
        %vm1031 = vmor %vm1029, %vm1030
        %v1032 = vsel %vm1031, %v1024, %v1028
        %v1033 = vand.u32 2147483647, %v1002
        %vm1034 = vcmp.eq.f32.partialorder %v1033, 8.507059e+37
        %v1035 = vand.u32 %v1002, 2147483648
        %v1036 = vor.u32 1.1754944e-38, %v1035
        %v1037 = vsel %vm1034, %v1036, %v1032
        %v1038 = vmul.f32 1.0, %v1037
        %v1039 = vrcp.pop %v1003
        %v1040 = vmul.f32 %v1003, %v1039
        %v1041 = vsub.f32 1.0, %v1040
        %v1042 = vmul.f32 %v1039, %v1041
        %v1043 = vadd.f32 %v1039, %v1042
        %vm1044 = vweird.f32 %v1003
        %vm1045 = vweird.f32 %v1039
        %vm1046 = vmor %vm1044, %vm1045
        %v1047 = vsel %vm1046, %v1039, %v1043
        %v1048 = vand.u32 2147483647, %v1003
        %vm1049 = vcmp.eq.f32.partialorder %v1048, 8.507059e+37
        %v1050 = vand.u32 %v1003, 2147483648
        %v1051 = vor.u32 1.1754944e-38, %v1050
        %v1052 = vsel %vm1049, %v1051, %v1047
        %v1053 = vmul.f32 1.0, %v1052
        %v1054 = vrcp.pop %v1004
        %v1055 = vmul.f32 %v1004, %v1054
        %v1056 = vsub.f32 1.0, %v1055
        %v1057 = vmul.f32 %v1054, %v1056
        %v1058 = vadd.f32 %v1054, %v1057
        %vm1059 = vweird.f32 %v1004
        %vm1060 = vweird.f32 %v1054
        %vm1061 = vmor %vm1059, %vm1060
        %v1062 = vsel %vm1061, %v1054, %v1058
        %v1063 = vand.u32 2147483647, %v1004
        %vm1064 = vcmp.eq.f32.partialorder %v1063, 8.507059e+37
        %v1065 = vand.u32 %v1004, 2147483648
        %v1066 = vor.u32 1.1754944e-38, %v1065
        %v1067 = vsel %vm1064, %v1066, %v1062
        %v1068 = vmul.f32 1.0, %v1067
        %v1069 = vrcp.pop %v1005
        %v1070 = vmul.f32 %v1005, %v1069
        %v1071 = vsub.f32 1.0, %v1070
        %v1072 = vmul.f32 %v1069, %v1071
        %v1073 = vadd.f32 %v1069, %v1072
        %vm1074 = vweird.f32 %v1005
        %vm1075 = vweird.f32 %v1069
        %vm1076 = vmor %vm1074, %vm1075
        %v1077 = vsel %vm1076, %v1069, %v1073
        %v1078 = vand.u32 2147483647, %v1005
        %vm1079 = vcmp.eq.f32.partialorder %v1078, 8.507059e+37
        %v1080 = vand.u32 %v1005, 2147483648
        %v1081 = vor.u32 1.1754944e-38, %v1080
        %v1082 = vsel %vm1079, %v1081, %v1077
        %v1083 = vmul.f32 1.0, %v1082
        %v1084 = vrcp.pop %v1006
        %v1085 = vmul.f32 %v1006, %v1084
        %v1086 = vsub.f32 1.0, %v1085
        %v1087 = vmul.f32 %v1084, %v1086
        %v1088 = vadd.f32 %v1084, %v1087
        %vm1089 = vweird.f32 %v1006
        %vm1090 = vweird.f32 %v1084
        %vm1091 = vmor %vm1089, %vm1090
        %v1092 = vsel %vm1091, %v1084, %v1088
        %v1093 = vand.u32 2147483647, %v1006
        %vm1094 = vcmp.eq.f32.partialorder %v1093, 8.507059e+37
        %v1095 = vand.u32 %v1006, 2147483648
        %v1096 = vor.u32 1.1754944e-38, %v1095
        %v1097 = vsel %vm1094, %v1096, %v1092
        %v1098 = vmul.f32 1.0, %v1097
        %v1099 = vrcp.pop %v1007
        %v1100 = vmul.f32 %v1007, %v1099
        %v1101 = vsub.f32 1.0, %v1100
        %v1102 = vmul.f32 %v1099, %v1101
        %v1103 = vadd.f32 %v1099, %v1102
        %vm1104 = vweird.f32 %v1007
        %vm1105 = vweird.f32 %v1099
        %vm1106 = vmor %vm1104, %vm1105
        %v1107 = vsel %vm1106, %v1099, %v1103
        %v1108 = vand.u32 2147483647, %v1007
        %vm1109 = vcmp.eq.f32.partialorder %v1108, 8.507059e+37
        %v1110 = vand.u32 %v1007, 2147483648
        %v1111 = vor.u32 1.1754944e-38, %v1110
        %v1112 = vsel %vm1109, %v1111, %v1107
        %v1113 = vmul.f32 1.0, %v1112
        %v1114 = vrcp.pop %v1008
        %v1115 = vmul.f32 %v1008, %v1114
        %v1116 = vsub.f32 1.0, %v1115
        %v1117 = vmul.f32 %v1114, %v1116
        %v1118 = vadd.f32 %v1114, %v1117
        %vm1119 = vweird.f32 %v1008
        %vm1120 = vweird.f32 %v1114
        %vm1121 = vmor %vm1119, %vm1120
        %v1122 = vsel %vm1121, %v1114, %v1118
        %v1123 = vand.u32 2147483647, %v1008
        %vm1124 = vcmp.eq.f32.partialorder %v1123, 8.507059e+37
        %v1125 = vand.u32 %v1008, 2147483648
        %v1126 = vor.u32 1.1754944e-38, %v1125
        %v1127 = vsel %vm1124, %v1126, %v1122
        %v1128 = vmul.f32 1.0, %v1127
        %vm1129 = vcmp.ge.f32.partialorder %v961, 0.0
        %vm1130 = vcmp.ge.f32.partialorder %v962, 0.0
        %vm1131 = vcmp.ge.f32.partialorder %v963, 0.0
        %vm1132 = vcmp.ge.f32.partialorder %v964, 0.0
        %vm1133 = vcmp.ge.f32.partialorder %v965, 0.0
        %vm1134 = vcmp.ge.f32.partialorder %v966, 0.0
        %vm1135 = vcmp.ge.f32.partialorder %v967, 0.0
        %vm1136 = vcmp.ge.f32.partialorder %v968, 0.0
        %v1137 = vmul.f32 %v986, %v1023
        %v1138 = vmul.f32 %v988, %v1038
        %v1139 = vmul.f32 %v990, %v1053
        %v1140 = vmul.f32 %v992, %v1068
        %v1141 = vmul.f32 %v994, %v1083
        %v1142 = vmul.f32 %v996, %v1098
        %v1143 = vmul.f32 %v998, %v1113
        %v1144 = vmul.f32 %v1000, %v1128
        %v1145 = vsel %vm1129, %v1023, %v1137
        %v1146 = vsel %vm1130, %v1038, %v1138
        %v1147 = vsel %vm1131, %v1053, %v1139
        %v1148 = vsel %vm1132, %v1068, %v1140
        %v1149 = vsel %vm1133, %v1083, %v1141
        %v1150 = vsel %vm1134, %v1098, %v1142
        %v1151 = vsel %vm1135, %v1113, %v1143
        %v1152 = vsel %vm1136, %v1128, %v1144
        %1161 = vset.pattern.permute.xlu0 0
        %1162 = vperm.xlu0 %1161, %v1145
        %v1163 = vpop.permute.xlu0 %1162
        %1164 = vset.pattern.permute.xlu0 0
        %1165 = vperm.xlu0 %1164, %v1146
        %v1166 = vpop.permute.xlu0 %1165
        %1167 = vset.pattern.permute.xlu0 0
        %1168 = vperm.xlu0 %1167, %v1147
        %v1169 = vpop.permute.xlu0 %1168
        %1170 = vset.pattern.permute.xlu0 0
        %1171 = vperm.xlu0 %1170, %v1148
        %v1172 = vpop.permute.xlu0 %1171
        %1173 = vset.pattern.permute.xlu0 0
        %1174 = vperm.xlu0 %1173, %v1149
        %v1175 = vpop.permute.xlu0 %1174
        %1176 = vset.pattern.permute.xlu0 0
        %1177 = vperm.xlu0 %1176, %v1150
        %v1178 = vpop.permute.xlu0 %1177
        %1179 = vset.pattern.permute.xlu0 0
        %1180 = vperm.xlu0 %1179, %v1151
        %v1181 = vpop.permute.xlu0 %1180
        %1182 = vset.pattern.permute.xlu0 0
        %1183 = vperm.xlu0 %1182, %v1152
        %v1184 = vpop.permute.xlu0 %1183
        %v1185 = vlaneseq
        %v1186 = vand.u32 %v1185, 127
        %v1187 = vperm.slane %v1163, %v1186
        %v1188 = vperm.slane %v1166, %v1186
        %v1189 = vperm.slane %v1169, %v1186
        %v1190 = vperm.slane %v1172, %v1186
        %v1191 = vperm.slane %v1175, %v1186
        %v1192 = vperm.slane %v1178, %v1186
        %v1193 = vperm.slane %v1181, %v1186
        %v1194 = vperm.slane %v1184, %v1186
        %vm1195 = vcmask 1041409
        %v1196 = vsel %vm1195, %v1188, %v1187
        %vm1197 = vcmask 1042434
        %v1198 = vsel %vm1197, %v1189, %v1196
        %vm1199 = vcmask 1043459
        %v1200 = vsel %vm1199, %v1190, %v1198
        %vm1201 = vcmask 1044484
        %v1202 = vsel %vm1201, %v1191, %v1200
        %vm1203 = vcmask 1045509
        %v1204 = vsel %vm1203, %v1192, %v1202
        %vm1205 = vcmask 1046534
        %v1206 = vsel %vm1205, %v1193, %v1204
        %vm1207 = vcmask 1047559
        %v1208 = vsel %vm1207, %v1194, %v1206
        %vm1210 = vcmask 64512
        %1211 = vst.msk [vmem:[%s468] sm:$0xff] %vm1210, %v1208
        %s1212 = scalar_lea.vmem [#allocation9], 16
        %v1213 = vld [vmem:[%s1212] sm:$0xff]
        %v1214 = vld [vmem:[%s1212 + $0x8] sm:$0xff]
        %s1215 = scalar_lea.vmem %s4, 1
        %v1216 = vld [vmem:[%s1215] sm:$0x1]
        %v1218 = vperm.slane %v1216, 0
        %1220 = vmatpush.msra.mxu0 0.0
        %1221 = vmatpush.msra.mxu0 0.0
        %1222 = vmatpush.msra.mxu0 0.0
        %1223 = vmatpush.msra.mxu0 0.0
        %1224 = vmatpush.msra.mxu0 0.0
        %1225 = vmatpush.msra.mxu0 0.0
        %1226 = vmatpush.msra.mxu0 0.0
        %1227 = vmatpush.msra.mxu0 0.0
        %1228 = vmatpush.msra.mxu0 0.0
        %1229 = vmatpush.msra.mxu0 0.0
        %1230 = vmatpush.msra.mxu0 0.0
        %1231 = vmatpush.msra.mxu0 0.0
        %1232 = vmatpush.msra.mxu0 0.0
        %1233 = vmatpush.msra.mxu0 0.0
        %v1234 = vand.u32 %v1214, 4294901760
        %1235 = vmatpush.msra.mxu0 %v1234
        %v1236 = vand.u32 %v1213, 4294901760
        %1237 = vmatpush.msra.mxu0 %v1236
        %v1238 = vand.u32 %v480, 4294901760
        %v1239 = vsub.f32 %v480, %v1238
        %v1240 = vand.u32 %v1239, 4294901760
        %v1241 = vsub.f32 %v1239, %v1240
        %v1242 = vand.u32 %v1241, 4294901760
        %1243 = vmatmul.f32.gmra.mxu0 %v1242
        %v1244 = vpop.f32.mrf.mxu0
        %v1245 = vadd.f32 %v1218, %v1244
        %1246 = vdwg.mxu0
        %1247 = vmatpush.msra.mxu0 0.0
        %1248 = vmatpush.msra.mxu0 0.0
        %1249 = vmatpush.msra.mxu0 0.0
        %1250 = vmatpush.msra.mxu0 0.0
        %1251 = vmatpush.msra.mxu0 0.0
        %1252 = vmatpush.msra.mxu0 0.0
        %1253 = vmatpush.msra.mxu0 0.0
        %1254 = vmatpush.msra.mxu0 0.0
        %1255 = vmatpush.msra.mxu0 0.0
        %1256 = vmatpush.msra.mxu0 0.0
        %1257 = vmatpush.msra.mxu0 0.0
        %1258 = vmatpush.msra.mxu0 0.0
        %1259 = vmatpush.msra.mxu0 0.0
        %1260 = vmatpush.msra.mxu0 0.0
        %v1261 = vand.u32 %v1214, 4294901760
        %v1262 = vsub.f32 %v1214, %v1261
        %v1263 = vand.u32 %v1262, 4294901760
        %v1264 = vsub.f32 %v1262, %v1263
        %v1265 = vand.u32 %v1264, 4294901760
        %1266 = vmatpush.msra.mxu0 %v1265
        %v1267 = vand.u32 %v1213, 4294901760
        %v1268 = vsub.f32 %v1213, %v1267
        %v1269 = vand.u32 %v1268, 4294901760
        %v1270 = vsub.f32 %v1268, %v1269
        %v1271 = vand.u32 %v1270, 4294901760
        %1272 = vmatpush.msra.mxu0 %v1271
        %v1273 = vand.u32 %v480, 4294901760
        %1274 = vmatmul.f32.gmra.mxu0 %v1273
        %v1275 = vpop.f32.mrf.mxu0
        %v1276 = vadd.f32 %v1245, %v1275
        %1277 = vdwg.mxu0
        %1278 = vmatpush.msra.mxu0 0.0
        %1279 = vmatpush.msra.mxu0 0.0
        %1280 = vmatpush.msra.mxu0 0.0
        %1281 = vmatpush.msra.mxu0 0.0
        %1282 = vmatpush.msra.mxu0 0.0
        %1283 = vmatpush.msra.mxu0 0.0
        %1284 = vmatpush.msra.mxu0 0.0
        %1285 = vmatpush.msra.mxu0 0.0
        %1286 = vmatpush.msra.mxu0 0.0
        %1287 = vmatpush.msra.mxu0 0.0
        %1288 = vmatpush.msra.mxu0 0.0
        %1289 = vmatpush.msra.mxu0 0.0
        %1290 = vmatpush.msra.mxu0 0.0
        %1291 = vmatpush.msra.mxu0 0.0
        %v1292 = vand.u32 %v1214, 4294901760
        %v1293 = vsub.f32 %v1214, %v1292
        %1294 = vmatpush.msra.mxu0 %v1293
        %v1295 = vand.u32 %v1213, 4294901760
        %v1296 = vsub.f32 %v1213, %v1295
        %1297 = vmatpush.msra.mxu0 %v1296
        %v1298 = vand.u32 %v480, 4294901760
        %v1299 = vsub.f32 %v480, %v1298
        %1300 = vmatmul.f32.gmra.mxu0 %v1299
        %v1301 = vpop.f32.mrf.mxu0
        %v1302 = vadd.f32 %v1276, %v1301
        %1303 = vdwg.mxu0
        %1304 = vmatpush.msra.mxu0 0.0
        %1305 = vmatpush.msra.mxu0 0.0
        %1306 = vmatpush.msra.mxu0 0.0
        %1307 = vmatpush.msra.mxu0 0.0
        %1308 = vmatpush.msra.mxu0 0.0
        %1309 = vmatpush.msra.mxu0 0.0
        %1310 = vmatpush.msra.mxu0 0.0
        %1311 = vmatpush.msra.mxu0 0.0
        %1312 = vmatpush.msra.mxu0 0.0
        %1313 = vmatpush.msra.mxu0 0.0
        %1314 = vmatpush.msra.mxu0 0.0
        %1315 = vmatpush.msra.mxu0 0.0
        %1316 = vmatpush.msra.mxu0 0.0
        %1317 = vmatpush.msra.mxu0 0.0
        %v1318 = vand.u32 %v1214, 4294901760
        %1319 = vmatpush.msra.mxu0 %v1318
        %v1320 = vand.u32 %v1213, 4294901760
        %1321 = vmatpush.msra.mxu0 %v1320
        %v1322 = vand.u32 %v480, 4294901760
        %v1323 = vsub.f32 %v480, %v1322
        %v1324 = vand.u32 %v1323, 4294901760
        %1325 = vmatmul.f32.gmra.mxu0 %v1324
        %v1326 = vpop.f32.mrf.mxu0
        %v1327 = vadd.f32 %v1302, %v1326
        %1328 = vdwg.mxu0
        %1329 = vmatpush.msra.mxu0 0.0
        %1330 = vmatpush.msra.mxu0 0.0
        %1331 = vmatpush.msra.mxu0 0.0
        %1332 = vmatpush.msra.mxu0 0.0
        %1333 = vmatpush.msra.mxu0 0.0
        %1334 = vmatpush.msra.mxu0 0.0
        %1335 = vmatpush.msra.mxu0 0.0
        %1336 = vmatpush.msra.mxu0 0.0
        %1337 = vmatpush.msra.mxu0 0.0
        %1338 = vmatpush.msra.mxu0 0.0
        %1339 = vmatpush.msra.mxu0 0.0
        %1340 = vmatpush.msra.mxu0 0.0
        %1341 = vmatpush.msra.mxu0 0.0
        %1342 = vmatpush.msra.mxu0 0.0
        %v1343 = vand.u32 %v1214, 4294901760
        %v1344 = vsub.f32 %v1214, %v1343
        %v1345 = vand.u32 %v1344, 4294901760
        %1346 = vmatpush.msra.mxu0 %v1345
        %v1347 = vand.u32 %v1213, 4294901760
        %v1348 = vsub.f32 %v1213, %v1347
        %v1349 = vand.u32 %v1348, 4294901760
        %1350 = vmatpush.msra.mxu0 %v1349
        %v1351 = vand.u32 %v480, 4294901760
        %1352 = vmatmul.f32.gmra.mxu0 %v1351
        %v1353 = vpop.f32.mrf.mxu0
        %v1354 = vadd.f32 %v1327, %v1353
        %1355 = vdwg.mxu0
        %1356 = vmatpush.msra.mxu0 0.0
        %1357 = vmatpush.msra.mxu0 0.0
        %1358 = vmatpush.msra.mxu0 0.0
        %1359 = vmatpush.msra.mxu0 0.0
        %1360 = vmatpush.msra.mxu0 0.0
        %1361 = vmatpush.msra.mxu0 0.0
        %1362 = vmatpush.msra.mxu0 0.0
        %1363 = vmatpush.msra.mxu0 0.0
        %1364 = vmatpush.msra.mxu0 0.0
        %1365 = vmatpush.msra.mxu0 0.0
        %1366 = vmatpush.msra.mxu0 0.0
        %1367 = vmatpush.msra.mxu0 0.0
        %1368 = vmatpush.msra.mxu0 0.0
        %1369 = vmatpush.msra.mxu0 0.0
        %v1370 = vand.u32 %v1214, 4294901760
        %1371 = vmatpush.msra.mxu0 %v1370
        %v1372 = vand.u32 %v1213, 4294901760
        %1373 = vmatpush.msra.mxu0 %v1372
        %v1374 = vand.u32 %v480, 4294901760
        %1375 = vmatmul.f32.gmra.mxu0 %v1374
        %v1376 = vpop.f32.mrf.mxu0
        %v1377 = vadd.f32 %v1354, %v1376
        %1378 = vdwg.mxu0
        %1379 = vst.msk [vmem:[#allocation2] sm:$0xff] %vm641, %v1377
        %s1380 = scalar_lea.vmem [#allocation11], 16
        %v1381 = vld [vmem:[%s1380] sm:$0xff]
        %v1382 = vld [vmem:[%s1380 + $0x8] sm:$0xff]
        %s1383 = scalar_lea.vmem %s6, 1
        %v1384 = vld [vmem:[%s1383] sm:$0x1]
        %v1386 = vperm.slane %v1384, 0
        %1388 = vmatpush.msra.mxu0 0.0
        %1389 = vmatpush.msra.mxu0 0.0
        %1390 = vmatpush.msra.mxu0 0.0
        %1391 = vmatpush.msra.mxu0 0.0
        %1392 = vmatpush.msra.mxu0 0.0
        %1393 = vmatpush.msra.mxu0 0.0
        %1394 = vmatpush.msra.mxu0 0.0
        %1395 = vmatpush.msra.mxu0 0.0
        %1396 = vmatpush.msra.mxu0 0.0
        %1397 = vmatpush.msra.mxu0 0.0
        %1398 = vmatpush.msra.mxu0 0.0
        %1399 = vmatpush.msra.mxu0 0.0
        %1400 = vmatpush.msra.mxu0 0.0
        %1401 = vmatpush.msra.mxu0 0.0
        %v1402 = vand.u32 %v1382, 4294901760
        %1403 = vmatpush.msra.mxu0 %v1402
        %v1404 = vand.u32 %v1381, 4294901760
        %1405 = vmatpush.msra.mxu0 %v1404
        %v1406 = vand.u32 %v650, 4294901760
        %v1407 = vsub.f32 %v650, %v1406
        %v1408 = vand.u32 %v1407, 4294901760
        %v1409 = vsub.f32 %v1407, %v1408
        %v1410 = vand.u32 %v1409, 4294901760
        %1411 = vmatmul.f32.gmra.mxu0 %v1410
        %v1412 = vpop.f32.mrf.mxu0
        %v1413 = vadd.f32 %v1386, %v1412
        %1414 = vdwg.mxu0
        %1415 = vmatpush.msra.mxu0 0.0
        %1416 = vmatpush.msra.mxu0 0.0
        %1417 = vmatpush.msra.mxu0 0.0
        %1418 = vmatpush.msra.mxu0 0.0
        %1419 = vmatpush.msra.mxu0 0.0
        %1420 = vmatpush.msra.mxu0 0.0
        %1421 = vmatpush.msra.mxu0 0.0
        %1422 = vmatpush.msra.mxu0 0.0
        %1423 = vmatpush.msra.mxu0 0.0
        %1424 = vmatpush.msra.mxu0 0.0
        %1425 = vmatpush.msra.mxu0 0.0
        %1426 = vmatpush.msra.mxu0 0.0
        %1427 = vmatpush.msra.mxu0 0.0
        %1428 = vmatpush.msra.mxu0 0.0
        %v1429 = vand.u32 %v1382, 4294901760
        %v1430 = vsub.f32 %v1382, %v1429
        %v1431 = vand.u32 %v1430, 4294901760
        %v1432 = vsub.f32 %v1430, %v1431
        %v1433 = vand.u32 %v1432, 4294901760
        %1434 = vmatpush.msra.mxu0 %v1433
        %v1435 = vand.u32 %v1381, 4294901760
        %v1436 = vsub.f32 %v1381, %v1435
        %v1437 = vand.u32 %v1436, 4294901760
        %v1438 = vsub.f32 %v1436, %v1437
        %v1439 = vand.u32 %v1438, 4294901760
        %1440 = vmatpush.msra.mxu0 %v1439
        %v1441 = vand.u32 %v650, 4294901760
        %1442 = vmatmul.f32.gmra.mxu0 %v1441
        %v1443 = vpop.f32.mrf.mxu0
        %v1444 = vadd.f32 %v1413, %v1443
        %1445 = vdwg.mxu0
        %1446 = vmatpush.msra.mxu0 0.0
        %1447 = vmatpush.msra.mxu0 0.0
        %1448 = vmatpush.msra.mxu0 0.0
        %1449 = vmatpush.msra.mxu0 0.0
        %1450 = vmatpush.msra.mxu0 0.0
        %1451 = vmatpush.msra.mxu0 0.0
        %1452 = vmatpush.msra.mxu0 0.0
        %1453 = vmatpush.msra.mxu0 0.0
        %1454 = vmatpush.msra.mxu0 0.0
        %1455 = vmatpush.msra.mxu0 0.0
        %1456 = vmatpush.msra.mxu0 0.0
        %1457 = vmatpush.msra.mxu0 0.0
        %1458 = vmatpush.msra.mxu0 0.0
        %1459 = vmatpush.msra.mxu0 0.0
        %v1460 = vand.u32 %v1382, 4294901760
        %v1461 = vsub.f32 %v1382, %v1460
        %1462 = vmatpush.msra.mxu0 %v1461
        %v1463 = vand.u32 %v1381, 4294901760
        %v1464 = vsub.f32 %v1381, %v1463
        %1465 = vmatpush.msra.mxu0 %v1464
        %v1466 = vand.u32 %v650, 4294901760
        %v1467 = vsub.f32 %v650, %v1466
        %1468 = vmatmul.f32.gmra.mxu0 %v1467
        %v1469 = vpop.f32.mrf.mxu0
        %v1470 = vadd.f32 %v1444, %v1469
        %1471 = vdwg.mxu0
        %1472 = vmatpush.msra.mxu0 0.0
        %1473 = vmatpush.msra.mxu0 0.0
        %1474 = vmatpush.msra.mxu0 0.0
        %1475 = vmatpush.msra.mxu0 0.0
        %1476 = vmatpush.msra.mxu0 0.0
        %1477 = vmatpush.msra.mxu0 0.0
        %1478 = vmatpush.msra.mxu0 0.0
        %1479 = vmatpush.msra.mxu0 0.0
        %1480 = vmatpush.msra.mxu0 0.0
        %1481 = vmatpush.msra.mxu0 0.0
        %1482 = vmatpush.msra.mxu0 0.0
        %1483 = vmatpush.msra.mxu0 0.0
        %1484 = vmatpush.msra.mxu0 0.0
        %1485 = vmatpush.msra.mxu0 0.0
        %v1486 = vand.u32 %v1382, 4294901760
        %1487 = vmatpush.msra.mxu0 %v1486
        %v1488 = vand.u32 %v1381, 4294901760
        %1489 = vmatpush.msra.mxu0 %v1488
        %v1490 = vand.u32 %v650, 4294901760
        %v1491 = vsub.f32 %v650, %v1490
        %v1492 = vand.u32 %v1491, 4294901760
        %1493 = vmatmul.f32.gmra.mxu0 %v1492
        %v1494 = vpop.f32.mrf.mxu0
        %v1495 = vadd.f32 %v1470, %v1494
        %1496 = vdwg.mxu0
        %1497 = vmatpush.msra.mxu0 0.0
        %1498 = vmatpush.msra.mxu0 0.0
        %1499 = vmatpush.msra.mxu0 0.0
        %1500 = vmatpush.msra.mxu0 0.0
        %1501 = vmatpush.msra.mxu0 0.0
        %1502 = vmatpush.msra.mxu0 0.0
        %1503 = vmatpush.msra.mxu0 0.0
        %1504 = vmatpush.msra.mxu0 0.0
        %1505 = vmatpush.msra.mxu0 0.0
        %1506 = vmatpush.msra.mxu0 0.0
        %1507 = vmatpush.msra.mxu0 0.0
        %1508 = vmatpush.msra.mxu0 0.0
        %1509 = vmatpush.msra.mxu0 0.0
        %1510 = vmatpush.msra.mxu0 0.0
        %v1511 = vand.u32 %v1382, 4294901760
        %v1512 = vsub.f32 %v1382, %v1511
        %v1513 = vand.u32 %v1512, 4294901760
        %1514 = vmatpush.msra.mxu0 %v1513
        %v1515 = vand.u32 %v1381, 4294901760
        %v1516 = vsub.f32 %v1381, %v1515
        %v1517 = vand.u32 %v1516, 4294901760
        %1518 = vmatpush.msra.mxu0 %v1517
        %v1519 = vand.u32 %v650, 4294901760
        %1520 = vmatmul.f32.gmra.mxu0 %v1519
        %v1521 = vpop.f32.mrf.mxu0
        %v1522 = vadd.f32 %v1495, %v1521
        %1523 = vdwg.mxu0
        %1524 = vmatpush.msra.mxu0 0.0
        %1525 = vmatpush.msra.mxu0 0.0
        %1526 = vmatpush.msra.mxu0 0.0
        %1527 = vmatpush.msra.mxu0 0.0
        %1528 = vmatpush.msra.mxu0 0.0
        %1529 = vmatpush.msra.mxu0 0.0
        %1530 = vmatpush.msra.mxu0 0.0
        %1531 = vmatpush.msra.mxu0 0.0
        %1532 = vmatpush.msra.mxu0 0.0
        %1533 = vmatpush.msra.mxu0 0.0
        %1534 = vmatpush.msra.mxu0 0.0
        %1535 = vmatpush.msra.mxu0 0.0
        %1536 = vmatpush.msra.mxu0 0.0
        %1537 = vmatpush.msra.mxu0 0.0
        %v1538 = vand.u32 %v1382, 4294901760
        %1539 = vmatpush.msra.mxu0 %v1538
        %v1540 = vand.u32 %v1381, 4294901760
        %1541 = vmatpush.msra.mxu0 %v1540
        %v1542 = vand.u32 %v650, 4294901760
        %1543 = vmatmul.f32.gmra.mxu0 %v1542
        %v1544 = vpop.f32.mrf.mxu0
        %v1545 = vadd.f32 %v1522, %v1544
        %1546 = vdwg.mxu0
        %v1547 = vld [vmem:[#allocation2] sm:$0xff]
        %v1549 = vrot.slane %v1547, 1
        %v1550 = vrot.slane %v1547, 2
        %v1551 = vrot.slane %v1547, 3
        %v1552 = vrot.slane %v1547, 4
        %v1553 = vrot.slane %v1547, 5
        %v1554 = vrot.slane %v1547, 6
        %v1555 = vrot.slane %v1547, 7
        %v1556 = vperm.slane %v1547, 0
        %v1557 = vperm.slane %v1549, 0
        %v1558 = vperm.slane %v1550, 0
        %v1559 = vperm.slane %v1551, 0
        %v1560 = vperm.slane %v1552, 0
        %v1561 = vperm.slane %v1553, 0
        %v1562 = vperm.slane %v1554, 0
        %v1563 = vperm.slane %v1555, 0
        %v1572 = vadd.f32 %v1556, %v1545
        %v1573 = vadd.f32 %v1557, %v1545
        %v1574 = vadd.f32 %v1558, %v1545
        %v1575 = vadd.f32 %v1559, %v1545
        %v1576 = vadd.f32 %v1560, %v1545
        %v1577 = vadd.f32 %v1561, %v1545
        %v1578 = vadd.f32 %v1562, %v1545
        %v1579 = vadd.f32 %v1563, %v1545
        %v1580 = vtanh.pop %v1572
        %v1581 = vtanh.pop %v1573
        %v1582 = vtanh.pop %v1574
        %v1583 = vtanh.pop %v1575
        %v1584 = vtanh.pop %v1576
        %v1585 = vtanh.pop %v1577
        %v1586 = vtanh.pop %v1578
        %v1587 = vtanh.pop %v1579
        %v1588 = vmul.f32 %v1580, %v853
        %v1589 = vmul.f32 %v1581, %v853
        %v1590 = vmul.f32 %v1582, %v853
        %v1591 = vmul.f32 %v1583, %v853
        %v1592 = vmul.f32 %v1584, %v853
        %v1593 = vmul.f32 %v1585, %v853
        %v1594 = vmul.f32 %v1586, %v853
        %v1595 = vmul.f32 %v1587, %v853
        %v1596 = vsel %vm641, %v1588, 0.0
        %1597 = vadd.xlane.f32.xlu0 %v1596
        %v1598 = vpop.xlane.xlu0 %1597
        %v1599 = vsel %vm641, %v1589, 0.0
        %1600 = vadd.xlane.f32.xlu0 %v1599
        %v1601 = vpop.xlane.xlu0 %1600
        %v1602 = vsel %vm641, %v1590, 0.0
        %1603 = vadd.xlane.f32.xlu0 %v1602
        %v1604 = vpop.xlane.xlu0 %1603
        %v1605 = vsel %vm641, %v1591, 0.0
        %1606 = vadd.xlane.f32.xlu0 %v1605
        %v1607 = vpop.xlane.xlu0 %1606
        %v1608 = vsel %vm641, %v1592, 0.0
        %1609 = vadd.xlane.f32.xlu0 %v1608
        %v1610 = vpop.xlane.xlu0 %1609
        %v1611 = vsel %vm641, %v1593, 0.0
        %1612 = vadd.xlane.f32.xlu0 %v1611
        %v1613 = vpop.xlane.xlu0 %1612
        %v1614 = vsel %vm641, %v1594, 0.0
        %1615 = vadd.xlane.f32.xlu0 %v1614
        %v1616 = vpop.xlane.xlu0 %1615
        %v1617 = vsel %vm641, %v1595, 0.0
        %1618 = vadd.xlane.f32.xlu0 %v1617
        %v1619 = vpop.xlane.xlu0 %1618
        %s1620 = sadd.s32 0, 8
        %s1621 = scalar_lea.vmem %s415, %s1620 [#allocation8]
        %v1622 = vld [vmem:[%s1621] sm:$0xff]
        %v1624 = vperm.slane %v1622, 0
        %v1625 = vlaneseq
        %v1626 = vshrl.u32 %v1625, 7
        %1628 = vset.pattern.permute.xlu0 %v1626
        %1629 = vperm.xlu0 %1628, %v1624
        %v1630 = vpop.permute.xlu0 %1629
        %v1631 = vperm.slane %v1622, 1
        %v1632 = vlaneseq
        %v1633 = vshrl.u32 %v1632, 7
        %1635 = vset.pattern.permute.xlu0 %v1633
        %1636 = vperm.xlu0 %1635, %v1631
        %v1637 = vpop.permute.xlu0 %1636
        %v1638 = vperm.slane %v1622, 2
        %v1639 = vlaneseq
        %v1640 = vshrl.u32 %v1639, 7
        %1642 = vset.pattern.permute.xlu0 %v1640
        %1643 = vperm.xlu0 %1642, %v1638
        %v1644 = vpop.permute.xlu0 %1643
        %v1645 = vperm.slane %v1622, 3
        %v1646 = vlaneseq
        %v1647 = vshrl.u32 %v1646, 7
        %1649 = vset.pattern.permute.xlu0 %v1647
        %1650 = vperm.xlu0 %1649, %v1645
        %v1651 = vpop.permute.xlu0 %1650
        %v1652 = vperm.slane %v1622, 4
        %v1653 = vlaneseq
        %v1654 = vshrl.u32 %v1653, 7
        %1656 = vset.pattern.permute.xlu0 %v1654
        %1657 = vperm.xlu0 %1656, %v1652
        %v1658 = vpop.permute.xlu0 %1657
        %v1659 = vperm.slane %v1622, 5
        %v1660 = vlaneseq
        %v1661 = vshrl.u32 %v1660, 7
        %1663 = vset.pattern.permute.xlu0 %v1661
        %1664 = vperm.xlu0 %1663, %v1659
        %v1665 = vpop.permute.xlu0 %1664
        %v1666 = vperm.slane %v1622, 6
        %v1667 = vlaneseq
        %v1668 = vshrl.u32 %v1667, 7
        %1670 = vset.pattern.permute.xlu0 %v1668
        %1671 = vperm.xlu0 %1670, %v1666
        %v1672 = vpop.permute.xlu0 %1671
        %v1673 = vperm.slane %v1622, 7
        %v1674 = vlaneseq
        %v1675 = vshrl.u32 %v1674, 7
        %1677 = vset.pattern.permute.xlu0 %v1675
        %1678 = vperm.xlu0 %1677, %v1673
        %v1679 = vpop.permute.xlu0 %1678
        %v1688 = vadd.f32 %v1598, %v1630
        %v1689 = vadd.f32 %v1601, %v1637
        %v1690 = vadd.f32 %v1604, %v1644
        %v1691 = vadd.f32 %v1607, %v1651
        %v1692 = vadd.f32 %v1610, %v1658
        %v1693 = vadd.f32 %v1613, %v1665
        %v1694 = vadd.f32 %v1616, %v1672
        %v1695 = vadd.f32 %v1619, %v1679
        %v1696 = vmul.f32 %v1688, 100.0
        %v1697 = vmul.f32 %v1689, 100.0
        %v1698 = vmul.f32 %v1690, 100.0
        %v1699 = vmul.f32 %v1691, 100.0
        %v1700 = vmul.f32 %v1692, 100.0
        %v1701 = vmul.f32 %v1693, 100.0
        %v1702 = vmul.f32 %v1694, 100.0
        %v1703 = vmul.f32 %v1695, 100.0
        %v1704 = vand.u32 2147483647, %v1696
        %v1705 = vand.u32 2147483647, %v1697
        %v1706 = vand.u32 2147483647, %v1698
        %v1707 = vand.u32 2147483647, %v1699
        %v1708 = vand.u32 2147483647, %v1700
        %v1709 = vand.u32 2147483647, %v1701
        %v1710 = vand.u32 2147483647, %v1702
        %v1711 = vand.u32 2147483647, %v1703
        %v1712 = vsub.f32 0.0, %v1704
        %v1713 = vsub.f32 0.0, %v1705
        %v1714 = vsub.f32 0.0, %v1706
        %v1715 = vsub.f32 0.0, %v1707
        %v1716 = vsub.f32 0.0, %v1708
        %v1717 = vsub.f32 0.0, %v1709
        %v1718 = vsub.f32 0.0, %v1710
        %v1719 = vsub.f32 0.0, %v1711
        %v1720 = vmul.f32 %v1712, 1.442695
        %v1721 = vpow.pop %v1720
        %v1722 = vmul.f32 %v1713, 1.442695
        %v1723 = vpow.pop %v1722
        %v1724 = vmul.f32 %v1714, 1.442695
        %v1725 = vpow.pop %v1724
        %v1726 = vmul.f32 %v1715, 1.442695
        %v1727 = vpow.pop %v1726
        %v1728 = vmul.f32 %v1716, 1.442695
        %v1729 = vpow.pop %v1728
        %v1730 = vmul.f32 %v1717, 1.442695
        %v1731 = vpow.pop %v1730
        %v1732 = vmul.f32 %v1718, 1.442695
        %v1733 = vpow.pop %v1732
        %v1734 = vmul.f32 %v1719, 1.442695
        %v1735 = vpow.pop %v1734
        %v1736 = vadd.f32 %v1721, 1.0
        %v1737 = vadd.f32 %v1723, 1.0
        %v1738 = vadd.f32 %v1725, 1.0
        %v1739 = vadd.f32 %v1727, 1.0
        %v1740 = vadd.f32 %v1729, 1.0
        %v1741 = vadd.f32 %v1731, 1.0
        %v1742 = vadd.f32 %v1733, 1.0
        %v1743 = vadd.f32 %v1735, 1.0
        %v1744 = vrcp.pop %v1736
        %v1745 = vmul.f32 %v1736, %v1744
        %v1746 = vsub.f32 1.0, %v1745
        %v1747 = vmul.f32 %v1744, %v1746
        %v1748 = vadd.f32 %v1744, %v1747
        %vm1749 = vweird.f32 %v1736
        %vm1750 = vweird.f32 %v1744
        %vm1751 = vmor %vm1749, %vm1750
        %v1752 = vsel %vm1751, %v1744, %v1748
        %v1753 = vand.u32 2147483647, %v1736
        %vm1754 = vcmp.eq.f32.partialorder %v1753, 8.507059e+37
        %v1755 = vand.u32 %v1736, 2147483648
        %v1756 = vor.u32 1.1754944e-38, %v1755
        %v1757 = vsel %vm1754, %v1756, %v1752
        %v1758 = vmul.f32 1.0, %v1757
        %v1759 = vrcp.pop %v1737
        %v1760 = vmul.f32 %v1737, %v1759
        %v1761 = vsub.f32 1.0, %v1760
        %v1762 = vmul.f32 %v1759, %v1761
        %v1763 = vadd.f32 %v1759, %v1762
        %vm1764 = vweird.f32 %v1737
        %vm1765 = vweird.f32 %v1759
        %vm1766 = vmor %vm1764, %vm1765
        %v1767 = vsel %vm1766, %v1759, %v1763
        %v1768 = vand.u32 2147483647, %v1737
        %vm1769 = vcmp.eq.f32.partialorder %v1768, 8.507059e+37
        %v1770 = vand.u32 %v1737, 2147483648
        %v1771 = vor.u32 1.1754944e-38, %v1770
        %v1772 = vsel %vm1769, %v1771, %v1767
        %v1773 = vmul.f32 1.0, %v1772
        %v1774 = vrcp.pop %v1738
        %v1775 = vmul.f32 %v1738, %v1774
        %v1776 = vsub.f32 1.0, %v1775
        %v1777 = vmul.f32 %v1774, %v1776
        %v1778 = vadd.f32 %v1774, %v1777
        %vm1779 = vweird.f32 %v1738
        %vm1780 = vweird.f32 %v1774
        %vm1781 = vmor %vm1779, %vm1780
        %v1782 = vsel %vm1781, %v1774, %v1778
        %v1783 = vand.u32 2147483647, %v1738
        %vm1784 = vcmp.eq.f32.partialorder %v1783, 8.507059e+37
        %v1785 = vand.u32 %v1738, 2147483648
        %v1786 = vor.u32 1.1754944e-38, %v1785
        %v1787 = vsel %vm1784, %v1786, %v1782
        %v1788 = vmul.f32 1.0, %v1787
        %v1789 = vrcp.pop %v1739
        %v1790 = vmul.f32 %v1739, %v1789
        %v1791 = vsub.f32 1.0, %v1790
        %v1792 = vmul.f32 %v1789, %v1791
        %v1793 = vadd.f32 %v1789, %v1792
        %vm1794 = vweird.f32 %v1739
        %vm1795 = vweird.f32 %v1789
        %vm1796 = vmor %vm1794, %vm1795
        %v1797 = vsel %vm1796, %v1789, %v1793
        %v1798 = vand.u32 2147483647, %v1739
        %vm1799 = vcmp.eq.f32.partialorder %v1798, 8.507059e+37
        %v1800 = vand.u32 %v1739, 2147483648
        %v1801 = vor.u32 1.1754944e-38, %v1800
        %v1802 = vsel %vm1799, %v1801, %v1797
        %v1803 = vmul.f32 1.0, %v1802
        %v1804 = vrcp.pop %v1740
        %v1805 = vmul.f32 %v1740, %v1804
        %v1806 = vsub.f32 1.0, %v1805
        %v1807 = vmul.f32 %v1804, %v1806
        %v1808 = vadd.f32 %v1804, %v1807
        %vm1809 = vweird.f32 %v1740
        %vm1810 = vweird.f32 %v1804
        %vm1811 = vmor %vm1809, %vm1810
        %v1812 = vsel %vm1811, %v1804, %v1808
        %v1813 = vand.u32 2147483647, %v1740
        %vm1814 = vcmp.eq.f32.partialorder %v1813, 8.507059e+37
        %v1815 = vand.u32 %v1740, 2147483648
        %v1816 = vor.u32 1.1754944e-38, %v1815
        %v1817 = vsel %vm1814, %v1816, %v1812
        %v1818 = vmul.f32 1.0, %v1817
        %v1819 = vrcp.pop %v1741
        %v1820 = vmul.f32 %v1741, %v1819
        %v1821 = vsub.f32 1.0, %v1820
        %v1822 = vmul.f32 %v1819, %v1821
        %v1823 = vadd.f32 %v1819, %v1822
        %vm1824 = vweird.f32 %v1741
        %vm1825 = vweird.f32 %v1819
        %vm1826 = vmor %vm1824, %vm1825
        %v1827 = vsel %vm1826, %v1819, %v1823
        %v1828 = vand.u32 2147483647, %v1741
        %vm1829 = vcmp.eq.f32.partialorder %v1828, 8.507059e+37
        %v1830 = vand.u32 %v1741, 2147483648
        %v1831 = vor.u32 1.1754944e-38, %v1830
        %v1832 = vsel %vm1829, %v1831, %v1827
        %v1833 = vmul.f32 1.0, %v1832
        %v1834 = vrcp.pop %v1742
        %v1835 = vmul.f32 %v1742, %v1834
        %v1836 = vsub.f32 1.0, %v1835
        %v1837 = vmul.f32 %v1834, %v1836
        %v1838 = vadd.f32 %v1834, %v1837
        %vm1839 = vweird.f32 %v1742
        %vm1840 = vweird.f32 %v1834
        %vm1841 = vmor %vm1839, %vm1840
        %v1842 = vsel %vm1841, %v1834, %v1838
        %v1843 = vand.u32 2147483647, %v1742
        %vm1844 = vcmp.eq.f32.partialorder %v1843, 8.507059e+37
        %v1845 = vand.u32 %v1742, 2147483648
        %v1846 = vor.u32 1.1754944e-38, %v1845
        %v1847 = vsel %vm1844, %v1846, %v1842
        %v1848 = vmul.f32 1.0, %v1847
        %v1849 = vrcp.pop %v1743
        %v1850 = vmul.f32 %v1743, %v1849
        %v1851 = vsub.f32 1.0, %v1850
        %v1852 = vmul.f32 %v1849, %v1851
        %v1853 = vadd.f32 %v1849, %v1852
        %vm1854 = vweird.f32 %v1743
        %vm1855 = vweird.f32 %v1849
        %vm1856 = vmor %vm1854, %vm1855
        %v1857 = vsel %vm1856, %v1849, %v1853
        %v1858 = vand.u32 2147483647, %v1743
        %vm1859 = vcmp.eq.f32.partialorder %v1858, 8.507059e+37
        %v1860 = vand.u32 %v1743, 2147483648
        %v1861 = vor.u32 1.1754944e-38, %v1860
        %v1862 = vsel %vm1859, %v1861, %v1857
        %v1863 = vmul.f32 1.0, %v1862
        %vm1864 = vcmp.ge.f32.partialorder %v1696, 0.0
        %vm1865 = vcmp.ge.f32.partialorder %v1697, 0.0
        %vm1866 = vcmp.ge.f32.partialorder %v1698, 0.0
        %vm1867 = vcmp.ge.f32.partialorder %v1699, 0.0
        %vm1868 = vcmp.ge.f32.partialorder %v1700, 0.0
        %vm1869 = vcmp.ge.f32.partialorder %v1701, 0.0
        %vm1870 = vcmp.ge.f32.partialorder %v1702, 0.0
        %vm1871 = vcmp.ge.f32.partialorder %v1703, 0.0
        %v1872 = vmul.f32 %v1721, %v1758
        %v1873 = vmul.f32 %v1723, %v1773
        %v1874 = vmul.f32 %v1725, %v1788
        %v1875 = vmul.f32 %v1727, %v1803
        %v1876 = vmul.f32 %v1729, %v1818
        %v1877 = vmul.f32 %v1731, %v1833
        %v1878 = vmul.f32 %v1733, %v1848
        %v1879 = vmul.f32 %v1735, %v1863
        %v1880 = vsel %vm1864, %v1758, %v1872
        %v1881 = vsel %vm1865, %v1773, %v1873
        %v1882 = vsel %vm1866, %v1788, %v1874
        %v1883 = vsel %vm1867, %v1803, %v1875
        %v1884 = vsel %vm1868, %v1818, %v1876
        %v1885 = vsel %vm1869, %v1833, %v1877
        %v1886 = vsel %vm1870, %v1848, %v1878
        %v1887 = vsel %vm1871, %v1863, %v1879
        %1896 = vset.pattern.permute.xlu0 0
        %1897 = vperm.xlu0 %1896, %v1880
        %v1898 = vpop.permute.xlu0 %1897
        %1899 = vset.pattern.permute.xlu0 0
        %1900 = vperm.xlu0 %1899, %v1881
        %v1901 = vpop.permute.xlu0 %1900
        %1902 = vset.pattern.permute.xlu0 0
        %1903 = vperm.xlu0 %1902, %v1882
        %v1904 = vpop.permute.xlu0 %1903
        %1905 = vset.pattern.permute.xlu0 0
        %1906 = vperm.xlu0 %1905, %v1883
        %v1907 = vpop.permute.xlu0 %1906
        %1908 = vset.pattern.permute.xlu0 0
        %1909 = vperm.xlu0 %1908, %v1884
        %v1910 = vpop.permute.xlu0 %1909
        %1911 = vset.pattern.permute.xlu0 0
        %1912 = vperm.xlu0 %1911, %v1885
        %v1913 = vpop.permute.xlu0 %1912
        %1914 = vset.pattern.permute.xlu0 0
        %1915 = vperm.xlu0 %1914, %v1886
        %v1916 = vpop.permute.xlu0 %1915
        %1917 = vset.pattern.permute.xlu0 0
        %1918 = vperm.xlu0 %1917, %v1887
        %v1919 = vpop.permute.xlu0 %1918
        %v1920 = vperm.slane %v1898, %v1186
        %v1921 = vperm.slane %v1901, %v1186
        %v1922 = vperm.slane %v1904, %v1186
        %v1923 = vperm.slane %v1907, %v1186
        %v1924 = vperm.slane %v1910, %v1186
        %v1925 = vperm.slane %v1913, %v1186
        %v1926 = vperm.slane %v1916, %v1186
        %v1927 = vperm.slane %v1919, %v1186
        %v1928 = vsel %vm1195, %v1921, %v1920
        %v1929 = vsel %vm1197, %v1922, %v1928
        %v1930 = vsel %vm1199, %v1923, %v1929
        %v1931 = vsel %vm1201, %v1924, %v1930
        %v1932 = vsel %vm1203, %v1925, %v1931
        %v1933 = vsel %vm1205, %v1926, %v1932
        %v1934 = vsel %vm1207, %v1927, %v1933
        %s1936 = scalar_lea.vmem %s468, %s1620 [#allocation12]
        %1937 = vst.msk [vmem:[%s1936] sm:$0xff] %vm1210, %v1934
        %s1938 = sand.u32 %s251, 1
        %s1939 = scalar_lea.sflag [#allocation5], %s1938
        %s1940 = sand.u32 %s251, 1
        %s1941 = smul.addr %s1940, 16
        %s1942 = scalar_lea.vmem [#allocation12], %s1941
        // Predicated region
        $region73: #{tpu_custom_call.1} parent=51 // pred_check
          %p1943 = pneg %p261
        $region74: #{tpu_custom_call.1} parent=51 // pred_check_branch
          %1945 = sbr.rel (%p1943) target = $region76
        $region75: #{tpu_custom_call.1} parent=51 // pred_region
          %1947 = vsyncadd %s1939, 0
          %s1948 = sadd.s32 %s36, %s35
          %s1949 = smul.addr %s34, 2
          %s1950 = sadd.s32 %s1948, %s1949
          %s1951 = smul.addr %s1950, 8
          %s1952 = scalar_lea.hbm %s8, %s1951
          %s1953 = sshll.u32 %s1942, 4
          %s1954 = int_to_ptr.vmem [resolvable:$true] %s1953
          %s1955 = sshll.u32 %s1952, 4
          %s1956 = int_to_ptr.hbm [resolvable:$true] %s1955
          %1961 = dma.vmem_to_hbm [thread:$0]  %s1954, 256, %s1956, %s1939, 128, 128, 8
        $region76: #{tpu_custom_call.1} parent=51 // pred_fallthru
          _
      $region52: #{tpu_custom_call.1} parent=5 // pred_fallthru
        _
      %p1962 = scmp.le.s32.totalorder 2, %s24
      // Predicated region
      $region77: #{tpu_custom_call.1} parent=5 // pred_check
        %p1963 = pneg %p1962
      $region78: #{tpu_custom_call.1} parent=5 // pred_check_branch
        %1965 = sbr.rel (%p1963) target = $region80
      $region79: #{tpu_custom_call.1} parent=5 // pred_region
        %s1966 = ssub.s32 %s24, 2
        // Predicated region
        $region81: #{tpu_custom_call.1} parent=79 // pred_check
          %p1967 = pneg %p267
        $region82: #{tpu_custom_call.1} parent=79 // pred_check_branch
          %1969 = sbr.rel (%p1967) target = $region84
        $region83: #{tpu_custom_call.1} parent=79 // pred_region
          %s1970 = sand.u32 %s252, 1
          %s1971 = scalar_lea.sflag [#allocation5], %s1970
          %s1972 = sand.u32 %s252, 1
          %s1973 = smul.addr %s1972, 16
          %s1974 = scalar_lea.vmem [#allocation12], %s1973
          %1976 = dma.done %s1971, 256
        $region84: #{tpu_custom_call.1} parent=79 // pred_fallthru
          _
      $region80: #{tpu_custom_call.1} parent=5 // pred_fallthru
        _
    $region6: #{tpu_custom_call.1} parent=1 // loop_footer
      %s28 = sadd.s32 1, %s24
    $region7: #{tpu_custom_call.1} parent=1 // loop_footer_branch
      %23 = sbr.rel target = $region3
    $region8: #{tpu_custom_call.1} parent=1 // loop_exit
      _
    %1977 = vsyncpa [#allocation4], 1
    %s1978 = scalar_lea.sflag [#allocation4], 1
    %1979 = vsyncpa %s1978, 1
    %1980 = vsyncpa [#allocation7], 1
    %s1981 = scalar_lea.sflag [#allocation7], 1
    %1982 = vsyncpa %s1981, 1
    %1983 = vsyncpa [#allocation10], 1
    %1984 = vsyncpa [#allocation5], 1
    %s1985 = scalar_lea.sflag [#allocation5], 1
    %1986 = vsyncpa %s1985, 1

</llo_original>
